<compile_context>
chip_gen: v7x
topology: tpu7x:2x2x1
jax: 0.10.0
libtpu: 0.0.40
codegen_flags: <defaults>
</compile_context>

<pallas_src>
import functools

import jax
import jax.numpy as jnp
import numpy as np
from jax.experimental import pallas as pl
from jax.experimental.pallas import tpu as pltpu

BN_EPS = 1e-5
HIDDEN = 32
OUT_DIM = 8
N_LAYER = 3
ADJ_DTYPE = jnp.bfloat16  # dense adjacencies travel / reside in bf16
# synthetic stand-ins for OGB full_atom_feature_dims / full_bond_feature_dims
ATOM_VOCABS = (17, 4, 7, 7, 5, 6, 6, 2, 2)
BOND_VOCABS = (5, 6, 2)

# Packed layout
#   W [10, H, H]: 0..2 conv Wt | 3 cycle-conv Wt | 4..7 VN-MLP Wt (w1,w2)x2
#                 | 8 head half A | 9 head half B      (head padded to H cols)
#   V [26, H]   : 0 vn_w | 1..9 per-layer (b,gamma,beta) | 10..12 cycle
#                 (b,gamma,beta) | 13..24 VN-MLP (b1,g1,be1,b2,g2,be2)x2
#                 | 25 head bias (padded)


# ----------------------------- shared math ---------------------------------
def _bn_relu(h, gamma, beta):
    # training-mode BatchNorm over axis 0 (batch stats, biased var) + ReLU
    mean = jnp.mean(h, axis=0, keepdims=True)
    var = jnp.mean((h - mean) ** 2, axis=0, keepdims=True)
    y = (h - mean) * jax.lax.rsqrt(var + BN_EPS) * gamma + beta
    return jnp.maximum(y, 0.0)


def _forward_math(a1, a2, x0, onehot, psum, W, V):
    """Whole post-embedding forward.  Shared by the fused Pallas kernel body
    (W, V are VMEM refs; static slices below become small loads) and the
    pure-JAX reference (W, V are arrays).  a1/a2 may be bf16; matmul
    accumulation and BN statistics stay f32."""
    f32 = jnp.float32
    num_graphs = psum.shape[0]
    hidden = x0.shape[1]
    adt = a1.dtype

    # inverse node counts for mean pooling (derived in-kernel; no pmean operand)
    inv_cnt = 1.0 / jnp.maximum(jnp.sum(psum, axis=1, keepdims=True), 1.0)  # [G,1]

    vcyc = 1 + 3 * N_LAYER                      # 10
    vvn0 = vcyc + 3                             # 13
    vlin = vvn0 + 6 * (N_LAYER - 1)             # 25

    # VN_embedding is a single learned row (init 0) broadcast to all graphs.
    vn = jnp.zeros((num_graphs, hidden), f32) + V[0:1, :]

    x = x0
    for i in range(N_LAYER):
        # x = x + VN0[batch]  as a matmul (onehot is [N, G] = psum.T)
        x_in = x + jnp.dot(onehot, vn, preferred_element_type=f32)
        b = V[1 + 3 * i:2 + 3 * i, :]
        g = V[2 + 3 * i:3 + 3 * i, :]
        be = V[3 + 3 * i:4 + 3 * i, :]
        # GCNConv(normalize=False): A1 @ (x W^T) + bias ; then BN, ReLU, +x
        h = jnp.dot(x_in, W[i], preferred_element_type=f32)
        agg = jnp.dot(a1, h.astype(adt), preferred_element_type=f32) + b
        x = _bn_relu(agg, g, be) + x_in
        if i < N_LAYER - 1:
            # virtual-node update: add-pool + VN -> (Lin,BN,ReLU)x2 -> VN +=
            r = vvn0 + 6 * i
            w1 = W[N_LAYER + 1 + 2 * i]
            w2 = W[N_LAYER + 2 + 2 * i]
            vna = jnp.dot(psum, x, preferred_element_type=f32) + vn
            hh = _bn_relu(jnp.dot(vna, w1, preferred_element_type=f32)
                          + V[r:r + 1, :], V[r + 1:r + 2, :], V[r + 2:r + 3, :])
            hh = _bn_relu(jnp.dot(hh, w2, preferred_element_type=f32)
                          + V[r + 3:r + 4, :], V[r + 4:r + 5, :], V[r + 5:r + 6, :])
            vn = vn + hh
    xa = x

    # cycle-adjacency branch: GCNConv(normalize=True) on x0, BN, ReLU, + x0
    hb = jnp.dot(x0, W[N_LAYER], preferred_element_type=f32)
    xb = _bn_relu(jnp.dot(a2, hb.astype(adt), preferred_element_type=f32)
                  + V[vcyc:vcyc + 1, :],
                  V[vcyc + 1:vcyc + 2, :], V[vcyc + 2:vcyc + 3, :]) + x0

    # global mean pool both branches (mean = inv_cnt * add-pool), split head
    aa = inv_cnt * jnp.dot(psum, xa, preferred_element_type=f32)
    bb = inv_cnt * jnp.dot(psum, xb, preferred_element_type=f32)
    logits = (jnp.dot(aa, W[3 * N_LAYER - 1], preferred_element_type=f32)
              + jnp.dot(bb, W[3 * N_LAYER], preferred_element_type=f32)
              + V[vlin:vlin + 1, :])
    return logits[:, :OUT_DIM]


# ----------------------------- operand packing -------------------------------
def _pack_params(params):
    H = HIDDEN
    zcols = jnp.zeros((H, H - OUT_DIM), jnp.float32)
    w_list = [params[f"conv{i}_Wt"] for i in range(N_LAYER)]
    w_list.append(params["conv2_Wt"])
    for i in range(N_LAYER - 1):
        m = params["vn_mlp"][i]
        w_list += [m[0], m[4]]
    w_list.append(jnp.concatenate([params["lin1_Wa_t"], zcols], axis=1))
    w_list.append(jnp.concatenate([params["lin1_Wb_t"], zcols], axis=1))
    W = jnp.stack(w_list).astype(jnp.float32)                      # [10, H, H]

    v_rows = [params["vn_w"]]
    for i in range(N_LAYER):
        v_rows += [params[f"conv{i}_b"], params[f"bn{i}_g"], params[f"bn{i}_beta"]]
    v_rows += [params["conv2_b"], params["bn2_g"], params["bn2_beta"]]
    for i in range(N_LAYER - 1):
        m = params["vn_mlp"][i]
        v_rows += [m[1], m[2], m[3], m[5], m[6], m[7]]
    v_rows.append(jnp.concatenate(
        [params["lin1_b"], jnp.zeros((1, H - OUT_DIM), jnp.float32)], axis=1))
    V = jnp.concatenate(v_rows, axis=0).astype(jnp.float32)        # [26, H]
    return W, V


# ----------------------------- fused Pallas kernel ---------------------------
def fused_forward_kernel(a1_ref, a2_ref, x0_ref, onehot_ref, psum_ref,
                         w_ref, v_ref, o_ref):
    # W / V stay as refs: unpacking happens via static ref slices (small loads)
    o_ref[...] = _forward_math(a1_ref[...], a2_ref[...], x0_ref[...],
                               onehot_ref[...], psum_ref[...], w_ref, v_ref)


def _vmem_limit_bytes():
    # ~108 MiB on v5e/v6e (128 MiB physical), ~54 MiB on v7x (64 MiB physical)
    try:
        cap = int(pltpu.get_tpu_info().vmem_capacity_bytes)
        return int(max(32 << 20, min(int(cap * 0.85), 112 << 20)))
    except Exception:
        return 64 << 20


def fused_forward(args, num_graphs):
    x0 = args[2]
    n, g, h, o = x0.shape[0], num_graphs, HIDDEN, OUT_DIM
    # advisory cost estimate so XLA schedules the embedding/scatter glue well
    flops = (N_LAYER + 1) * (2 * n * h * h + 2 * n * n * h)        # GCN layers
    flops += N_LAYER * 2 * n * g * h                                # VN broadcast
    flops += (N_LAYER - 1) * (2 * g * n * h + 4 * g * h * h)        # VN updates
    flops += 4 * g * n * h + 4 * g * h * h                          # pools + head
    transcendentals = (2 * N_LAYER + 2) * h                         # BN rsqrt
    bytes_accessed = sum(int(np.prod(a.shape)) * int(a.dtype.itemsize)
                         for a in args) + g * o * 4

    return pl.pallas_call(
        fused_forward_kernel,
        out_shape=jax.ShapeDtypeStruct((g, OUT_DIM), jnp.float32),
        in_specs=[pl.BlockSpec(memory_space=pltpu.MemorySpace.VMEM)] * len(args),
        out_specs=pl.BlockSpec(memory_space=pltpu.MemorySpace.VMEM),
        compiler_params=pltpu.CompilerParams(vmem_limit_bytes=_vmem_limit_bytes()),
        cost_estimate=pl.CostEstimate(flops=int(flops),
                                      transcendentals=int(transcendentals),
                                      bytes_accessed=int(bytes_accessed)),
    )(*args)


# ----------------------------- graph glue (plain JAX) ------------------------
def dense_adj(edge_index, edge_weight, num_nodes):
    src, dst = edge_index[0], edge_index[1]
    a = jnp.zeros((num_nodes, num_nodes), jnp.float32)
    return a.at[dst, src].add(edge_weight)          # aggregate at target node


def gcn_norm_dense(edge_index, num_nodes):
    # GCNConv(normalize=True): add self-loops, D^-1/2 (A+I) D^-1/2
    loop = jnp.arange(num_nodes, dtype=edge_index.dtype)
    src = jnp.concatenate([edge_index[0], loop])
    dst = jnp.concatenate([edge_index[1], loop])
    w = jnp.ones(src.shape[0], jnp.float32)
    deg = jnp.zeros((num_nodes,), jnp.float32).at[dst].add(w)
    dinv = jnp.where(deg > 0, jax.lax.rsqrt(deg), 0.0)
    norm = dinv[src] * w * dinv[dst]
    return jnp.zeros((num_nodes, num_nodes), jnp.float32).at[dst, src].add(norm)


# ----------------------------- full forward ----------------------------------
def forward(params, x_atom, edge_index, cycle_index, batch, edge_attr,
            num_graphs, use_pallas=True):
    num_nodes = x_atom.shape[0]
    # AtomEncoder / BondEncoder: sum of per-feature embedding lookups (glue)
    x0 = sum(params["atom_emb"][f][x_atom[:, f]] for f in range(len(ATOM_VOCABS)))
    ew = sum(params["bond_emb"][f][edge_attr[:, f]]
             for f in range(len(BOND_VOCABS)))[:, 0]        # BondEncoder(emb_dim=1)

    # dense adjacencies -> bf16 at the kernel boundary (halves HBM/VMEM bytes)
    a1 = dense_adj(edge_index, ew, num_nodes).astype(ADJ_DTYPE)
    a2 = gcn_norm_dense(cycle_index, num_nodes).astype(ADJ_DTYPE)

    # pooling operands: onehot [N,G] for the VN broadcast, psum [G,N] for
    # add-pool; mean-pool scaling is computed in-kernel (no pmean operand).
    onehot = (batch[:, None] == jnp.arange(num_graphs, dtype=batch.dtype)[None, :]
              ).astype(jnp.float32)
    psum = onehot.T

    W, V = _pack_params(params)
    args = (a1, a2, x0, onehot, psum, W, V)
    if use_pallas:
        return fused_forward(args, num_graphs)
    return _forward_math(*args)


# ----------------------------- params / inputs -------------------------------
def init_params(key):
    keys = iter(jax.random.split(key, 128))
    nrm = lambda shape, s=0.1: s * jax.random.normal(next(keys), shape, jnp.float32)
    p = {}
    p["atom_emb"] = [nrm((v, HIDDEN)) for v in ATOM_VOCABS]
    p["bond_emb"] = [nrm((v, 1)) for v in BOND_VOCABS]
    p["vn_w"] = jnp.zeros((1, HIDDEN), jnp.float32)          # VN_embedding init 0
    for i in range(N_LAYER):
        p[f"conv{i}_Wt"] = nrm((HIDDEN, HIDDEN))
        p[f"conv{i}_b"] = nrm((1, HIDDEN))
        p[f"bn{i}_g"] = 1.0 + nrm((1, HIDDEN))
        p[f"bn{i}_beta"] = nrm((1, HIDDEN))
    p["conv2_Wt"] = nrm((HIDDEN, HIDDEN))
    p["conv2_b"] = nrm((1, HIDDEN))
    p["bn2_g"] = 1.0 + nrm((1, HIDDEN))
    p["bn2_beta"] = nrm((1, HIDDEN))
    p["vn_mlp"] = []
    for _ in range(N_LAYER - 1):
        p["vn_mlp"].append((
            nrm((HIDDEN, HIDDEN)), nrm((1, HIDDEN)),
            1.0 + nrm((1, HIDDEN)), nrm((1, HIDDEN)),
            nrm((HIDDEN, HIDDEN)), nrm((1, HIDDEN)),
            1.0 + nrm((1, HIDDEN)), nrm((1, HIDDEN)),
        ))
    p["lin1_Wa_t"] = nrm((HIDDEN, OUT_DIM))   # Linear(2H, out) split into halves
    p["lin1_Wb_t"] = nrm((HIDDEN, OUT_DIM))
    p["lin1_b"] = nrm((1, OUT_DIM))
    return p


def rand_edges(key, nodes_per_graph, num_graphs, edges_per_graph):
    ks, kd = jax.random.split(key)
    src = jax.random.randint(ks, (num_graphs, edges_per_graph), 0, nodes_per_graph)
    dst = jax.random.randint(kd, (num_graphs, edges_per_graph), 0, nodes_per_graph)
    offs = (jnp.arange(num_graphs) * nodes_per_graph)[:, None]
    return jnp.stack([(src + offs).reshape(-1),
                      (dst + offs).reshape(-1)]).astype(jnp.int32)


if __name__ == "__main__":
    num_graphs, nodes_per_graph = 2, 12
    num_nodes = num_graphs * nodes_per_graph

    key = jax.random.PRNGKey(0)
    kx, ke, kc, ka = jax.random.split(key, 4)
    x_atom = jax.random.randint(kx, (num_nodes, len(ATOM_VOCABS)), 0,
                                jnp.array(ATOM_VOCABS, jnp.int32), dtype=jnp.int32)
    edge_index = rand_edges(ke, nodes_per_graph, num_graphs, 20)
    cycle_index = rand_edges(kc, nodes_per_graph, num_graphs, 12)
    edge_attr = jax.random.randint(ka, (edge_index.shape[1], len(BOND_VOCABS)), 0,
                                   jnp.array(BOND_VOCABS, jnp.int32), dtype=jnp.int32)
    batch = jnp.repeat(jnp.arange(num_graphs, dtype=jnp.int32), nodes_per_graph)

    params = init_params(jax.random.PRNGKey(12345))

    fwd = jax.jit(functools.partial(forward, num_graphs=num_graphs, use_pallas=True))
    out = jax.block_until_ready(
        fwd(params, x_atom, edge_index, cycle_index, batch, edge_attr))

    ref = forward(params, x_atom, edge_index, cycle_index, batch, edge_attr,
                  num_graphs=num_graphs, use_pallas=False)
    np.testing.assert_allclose(np.asarray(out), np.asarray(ref), rtol=2e-2, atol=2e-2)
    assert out.shape == (num_graphs, OUT_DIM)
    print("KERNEL_OK")
</pallas_src>

<mosaic_0001>
module attributes {stable_mosaic.version = 11 : i64} {
  func.func private @main(%arg0: i32) attributes {dimension_semantics = [#tpu.dimension_semantics<core_parallel>], iteration_bounds = array<i64: 2>, tpu.core_type = #tpu.core_type<sc_scalar_subcore>, window_params = []} {
    return
  }
}

module attributes {stable_mosaic.version = 11 : i64} {
  func.func private @main(%arg0: i32) attributes {dimension_semantics = [#tpu.dimension_semantics<core_parallel>], iteration_bounds = array<i64: 2>, tpu.core_type = #tpu.core_type<sc_scalar_subcore>, window_params = []} {
    return
  }
}

module attributes {stable_mosaic.version = 11 : i64} {
  func.func @fused_forward_kernel(%arg0: memref<24x24xbf16, #tpu.memory_space<vmem>>, %arg1: memref<24x24xbf16, #tpu.memory_space<vmem>>, %arg2: memref<24x32xf32, #tpu.memory_space<vmem>>, %arg3: memref<24x2xf32, #tpu.memory_space<vmem>>, %arg4: memref<2x24xf32, #tpu.memory_space<vmem>>, %arg5: memref<10x32x32xf32, #tpu.memory_space<vmem>>, %arg6: memref<26x32xf32, #tpu.memory_space<vmem>>, %arg7: memref<2x8xf32, #tpu.memory_space<vmem>>) attributes {dimension_semantics = [], scalar_prefetch = 0 : i64, scratch_operands = 0 : i64, tpu.core_type = #tpu.core_type<tc>} {
    %c0 = arith.constant 0 : index
    %c0_0 = arith.constant 0 : index
    %0 = vector.load %arg0[%c0, %c0_0] : memref<24x24xbf16, #tpu.memory_space<vmem>>, vector<24x24xbf16>
    %c0_1 = arith.constant 0 : index
    %c0_2 = arith.constant 0 : index
    %1 = vector.load %arg1[%c0_1, %c0_2] : memref<24x24xbf16, #tpu.memory_space<vmem>>, vector<24x24xbf16>
    %c0_3 = arith.constant 0 : index
    %c0_4 = arith.constant 0 : index
    %2 = vector.load %arg2[%c0_3, %c0_4] : memref<24x32xf32, #tpu.memory_space<vmem>>, vector<24x32xf32>
    %c0_5 = arith.constant 0 : index
    %c0_6 = arith.constant 0 : index
    %3 = vector.load %arg3[%c0_5, %c0_6] : memref<24x2xf32, #tpu.memory_space<vmem>>, vector<24x2xf32>
    %c0_7 = arith.constant 0 : index
    %c0_8 = arith.constant 0 : index
    %4 = vector.load %arg4[%c0_7, %c0_8] : memref<2x24xf32, #tpu.memory_space<vmem>>, vector<2x24xf32>
    %cst = arith.constant dense<0.000000e+00> : vector<2xf32>
    %5 = vector.multi_reduction <add>, %4, %cst [1] : vector<2x24xf32> to vector<2xf32>
    %6 = vector.shape_cast %5 : vector<2xf32> to vector<2x1xf32>
    %cst_9 = arith.constant 1.000000e+00 : f32
    %7 = vector.broadcast %cst_9 : f32 to vector<2x1xf32>
    %8 = arith.maximumf %6, %7 : vector<2x1xf32>
    %cst_10 = arith.constant 1.000000e+00 : f32
    %9 = vector.broadcast %cst_10 : f32 to vector<2x1xf32>
    %10 = arith.divf %9, %8 : vector<2x1xf32>
    %cst_11 = arith.constant 0.000000e+00 : f32
    %11 = vector.broadcast %cst_11 : f32 to vector<2x32xf32>
    %c0_12 = arith.constant 0 : index
    %c0_13 = arith.constant 0 : index
    %12 = vector.load %arg6[%c0_12, %c0_13] : memref<26x32xf32, #tpu.memory_space<vmem>>, vector<1x32xf32>
    %13 = vector.broadcast %12 : vector<1x32xf32> to vector<2x32xf32>
    %14 = arith.addf %11, %13 : vector<2x32xf32>
    %cst_14 = arith.constant dense<0.000000e+00> : vector<24x32xf32>
    %15 = tpu.matmul %3, %14, %cst_14 {dimension_numbers = #tpu.dot_dimension_numbers<[1], [0], [0], [1], [0, 0, 1, 1], [], []>} : vector<24x2xf32>, vector<2x32xf32>, vector<24x32xf32> -> vector<24x32xf32>
    %16 = arith.addf %2, %15 : vector<24x32xf32>
    %c1 = arith.constant 1 : index
    %c0_15 = arith.constant 0 : index
    %17 = vector.load %arg6[%c1, %c0_15] : memref<26x32xf32, #tpu.memory_space<vmem>>, vector<1x32xf32>
    %c2 = arith.constant 2 : index
    %c0_16 = arith.constant 0 : index
    %18 = vector.load %arg6[%c2, %c0_16] : memref<26x32xf32, #tpu.memory_space<vmem>>, vector<1x32xf32>
    %c3 = arith.constant 3 : index
    %c0_17 = arith.constant 0 : index
    %19 = vector.load %arg6[%c3, %c0_17] : memref<26x32xf32, #tpu.memory_space<vmem>>, vector<1x32xf32>
    %c0_18 = arith.constant 0 : index
    %c0_19 = arith.constant 0 : index
    %c0_20 = arith.constant 0 : index
    %20 = vector.load %arg5[%c0_18, %c0_19, %c0_20] : memref<10x32x32xf32, #tpu.memory_space<vmem>>, vector<1x32x32xf32>
    %21 = vector.shape_cast %20 : vector<1x32x32xf32> to vector<32x32xf32>
    %cst_21 = arith.constant dense<0.000000e+00> : vector<24x32xf32>
    %22 = tpu.matmul %16, %21, %cst_21 {dimension_numbers = #tpu.dot_dimension_numbers<[1], [0], [0], [1], [0, 0, 1, 1], [], []>} : vector<24x32xf32>, vector<32x32xf32>, vector<24x32xf32> -> vector<24x32xf32>
    %23 = arith.truncf %22 : vector<24x32xf32> to vector<24x32xbf16>
    %cst_22 = arith.constant dense<0.000000e+00> : vector<24x32xf32>
    %24 = tpu.matmul %0, %23, %cst_22 {dimension_numbers = #tpu.dot_dimension_numbers<[1], [0], [0], [1], [0, 0, 1, 1], [], []>} : vector<24x24xbf16>, vector<24x32xbf16>, vector<24x32xf32> -> vector<24x32xf32>
    %25 = vector.broadcast %17 : vector<1x32xf32> to vector<24x32xf32>
    %26 = arith.addf %24, %25 : vector<24x32xf32>
    %cst_23 = arith.constant dense<0.000000e+00> : vector<32xf32>
    %27 = vector.multi_reduction <add>, %26, %cst_23 [0] : vector<24x32xf32> to vector<32xf32>
    %28 = vector.shape_cast %27 : vector<32xf32> to vector<1x32xf32>
    %cst_24 = arith.constant 2.400000e+01 : f32
    %29 = vector.broadcast %cst_24 : f32 to vector<1x32xf32>
    %30 = arith.divf %28, %29 : vector<1x32xf32>
    %31 = vector.broadcast %30 : vector<1x32xf32> to vector<24x32xf32>
    %32 = arith.subf %26, %31 : vector<24x32xf32>
    %33 = arith.mulf %32, %32 : vector<24x32xf32>
    %cst_25 = arith.constant dense<0.000000e+00> : vector<32xf32>
    %34 = vector.multi_reduction <add>, %33, %cst_25 [0] : vector<24x32xf32> to vector<32xf32>
    %35 = vector.shape_cast %34 : vector<32xf32> to vector<1x32xf32>
    %cst_26 = arith.constant 2.400000e+01 : f32
    %36 = vector.broadcast %cst_26 : f32 to vector<1x32xf32>
    %37 = arith.divf %35, %36 : vector<1x32xf32>
    %38 = vector.broadcast %30 : vector<1x32xf32> to vector<24x32xf32>
    %39 = arith.subf %26, %38 : vector<24x32xf32>
    %cst_27 = arith.constant 9.99999974E-6 : f32
    %40 = vector.broadcast %cst_27 : f32 to vector<1x32xf32>
    %41 = arith.addf %37, %40 : vector<1x32xf32>
    %42 = math.rsqrt %41 : vector<1x32xf32>
    %43 = vector.broadcast %42 : vector<1x32xf32> to vector<24x32xf32>
    %44 = arith.mulf %39, %43 : vector<24x32xf32>
    %45 = vector.broadcast %18 : vector<1x32xf32> to vector<24x32xf32>
    %46 = arith.mulf %44, %45 : vector<24x32xf32>
    %47 = vector.broadcast %19 : vector<1x32xf32> to vector<24x32xf32>
    %48 = arith.addf %46, %47 : vector<24x32xf32>
    %cst_28 = arith.constant 0.000000e+00 : f32
    %49 = vector.broadcast %cst_28 : f32 to vector<24x32xf32>
    %50 = arith.maximumf %48, %49 : vector<24x32xf32>
    %51 = arith.addf %50, %16 : vector<24x32xf32>
    %c4 = arith.constant 4 : index
    %c0_29 = arith.constant 0 : index
    %c0_30 = arith.constant 0 : index
    %52 = vector.load %arg5[%c4, %c0_29, %c0_30] : memref<10x32x32xf32, #tpu.memory_space<vmem>>, vector<1x32x32xf32>
    %53 = vector.shape_cast %52 : vector<1x32x32xf32> to vector<32x32xf32>
    %c5 = arith.constant 5 : index
    %c0_31 = arith.constant 0 : index
    %c0_32 = arith.constant 0 : index
    %54 = vector.load %arg5[%c5, %c0_31, %c0_32] : memref<10x32x32xf32, #tpu.memory_space<vmem>>, vector<1x32x32xf32>
    %55 = vector.shape_cast %54 : vector<1x32x32xf32> to vector<32x32xf32>
    %cst_33 = arith.constant dense<0.000000e+00> : vector<2x32xf32>
    %56 = tpu.matmul %4, %51, %cst_33 {dimension_numbers = #tpu.dot_dimension_numbers<[1], [0], [0], [1], [0, 0, 1, 1], [], []>} : vector<2x24xf32>, vector<24x32xf32>, vector<2x32xf32> -> vector<2x32xf32>
    %57 = arith.addf %56, %14 : vector<2x32xf32>
    %cst_34 = arith.constant dense<0.000000e+00> : vector<2x32xf32>
    %58 = tpu.matmul %57, %53, %cst_34 {dimension_numbers = #tpu.dot_dimension_numbers<[1], [0], [0], [1], [0, 0, 1, 1], [], []>} : vector<2x32xf32>, vector<32x32xf32>, vector<2x32xf32> -> vector<2x32xf32>
    %c13 = arith.constant 13 : index
    %c0_35 = arith.constant 0 : index
    %59 = vector.load %arg6[%c13, %c0_35] : memref<26x32xf32, #tpu.memory_space<vmem>>, vector<1x32xf32>
    %60 = vector.broadcast %59 : vector<1x32xf32> to vector<2x32xf32>
    %61 = arith.addf %58, %60 : vector<2x32xf32>
    %c14 = arith.constant 14 : index
    %c0_36 = arith.constant 0 : index
    %62 = vector.load %arg6[%c14, %c0_36] : memref<26x32xf32, #tpu.memory_space<vmem>>, vector<1x32xf32>
    %c15 = arith.constant 15 : index
    %c0_37 = arith.constant 0 : index
    %63 = vector.load %arg6[%c15, %c0_37] : memref<26x32xf32, #tpu.memory_space<vmem>>, vector<1x32xf32>
    %cst_38 = arith.constant dense<0.000000e+00> : vector<32xf32>
    %64 = vector.multi_reduction <add>, %61, %cst_38 [0] : vector<2x32xf32> to vector<32xf32>
    %65 = vector.shape_cast %64 : vector<32xf32> to vector<1x32xf32>
    %cst_39 = arith.constant 2.000000e+00 : f32
    %66 = vector.broadcast %cst_39 : f32 to vector<1x32xf32>
    %67 = arith.divf %65, %66 : vector<1x32xf32>
    %68 = vector.broadcast %67 : vector<1x32xf32> to vector<2x32xf32>
    %69 = arith.subf %61, %68 : vector<2x32xf32>
    %70 = arith.mulf %69, %69 : vector<2x32xf32>
    %cst_40 = arith.constant dense<0.000000e+00> : vector<32xf32>
    %71 = vector.multi_reduction <add>, %70, %cst_40 [0] : vector<2x32xf32> to vector<32xf32>
    %72 = vector.shape_cast %71 : vector<32xf32> to vector<1x32xf32>
    %cst_41 = arith.constant 2.000000e+00 : f32
    %73 = vector.broadcast %cst_41 : f32 to vector<1x32xf32>
    %74 = arith.divf %72, %73 : vector<1x32xf32>
    %75 = vector.broadcast %67 : vector<1x32xf32> to vector<2x32xf32>
    %76 = arith.subf %61, %75 : vector<2x32xf32>
    %cst_42 = arith.constant 9.99999974E-6 : f32
    %77 = vector.broadcast %cst_42 : f32 to vector<1x32xf32>
    %78 = arith.addf %74, %77 : vector<1x32xf32>
    %79 = math.rsqrt %78 : vector<1x32xf32>
    %80 = vector.broadcast %79 : vector<1x32xf32> to vector<2x32xf32>
    %81 = arith.mulf %76, %80 : vector<2x32xf32>
    %82 = vector.broadcast %62 : vector<1x32xf32> to vector<2x32xf32>
    %83 = arith.mulf %81, %82 : vector<2x32xf32>
    %84 = vector.broadcast %63 : vector<1x32xf32> to vector<2x32xf32>
    %85 = arith.addf %83, %84 : vector<2x32xf32>
    %cst_43 = arith.constant 0.000000e+00 : f32
    %86 = vector.broadcast %cst_43 : f32 to vector<2x32xf32>
    %87 = arith.maximumf %85, %86 : vector<2x32xf32>
    %cst_44 = arith.constant dense<0.000000e+00> : vector<2x32xf32>
    %88 = tpu.matmul %87, %55, %cst_44 {dimension_numbers = #tpu.dot_dimension_numbers<[1], [0], [0], [1], [0, 0, 1, 1], [], []>} : vector<2x32xf32>, vector<32x32xf32>, vector<2x32xf32> -> vector<2x32xf32>
    %c16 = arith.constant 16 : index
    %c0_45 = arith.constant 0 : index
    %89 = vector.load %arg6[%c16, %c0_45] : memref<26x32xf32, #tpu.memory_space<vmem>>, vector<1x32xf32>
    %90 = vector.broadcast %89 : vector<1x32xf32> to vector<2x32xf32>
    %91 = arith.addf %88, %90 : vector<2x32xf32>
    %c17 = arith.constant 17 : index
    %c0_46 = arith.constant 0 : index
    %92 = vector.load %arg6[%c17, %c0_46] : memref<26x32xf32, #tpu.memory_space<vmem>>, vector<1x32xf32>
    %c18 = arith.constant 18 : index
    %c0_47 = arith.constant 0 : index
    %93 = vector.load %arg6[%c18, %c0_47] : memref<26x32xf32, #tpu.memory_space<vmem>>, vector<1x32xf32>
    %cst_48 = arith.constant dense<0.000000e+00> : vector<32xf32>
    %94 = vector.multi_reduction <add>, %91, %cst_48 [0] : vector<2x32xf32> to vector<32xf32>
    %95 = vector.shape_cast %94 : vector<32xf32> to vector<1x32xf32>
    %cst_49 = arith.constant 2.000000e+00 : f32
    %96 = vector.broadcast %cst_49 : f32 to vector<1x32xf32>
    %97 = arith.divf %95, %96 : vector<1x32xf32>
    %98 = vector.broadcast %97 : vector<1x32xf32> to vector<2x32xf32>
    %99 = arith.subf %91, %98 : vector<2x32xf32>
    %100 = arith.mulf %99, %99 : vector<2x32xf32>
    %cst_50 = arith.constant dense<0.000000e+00> : vector<32xf32>
    %101 = vector.multi_reduction <add>, %100, %cst_50 [0] : vector<2x32xf32> to vector<32xf32>
    %102 = vector.shape_cast %101 : vector<32xf32> to vector<1x32xf32>
    %cst_51 = arith.constant 2.000000e+00 : f32
    %103 = vector.broadcast %cst_51 : f32 to vector<1x32xf32>
    %104 = arith.divf %102, %103 : vector<1x32xf32>
    %105 = vector.broadcast %97 : vector<1x32xf32> to vector<2x32xf32>
    %106 = arith.subf %91, %105 : vector<2x32xf32>
    %cst_52 = arith.constant 9.99999974E-6 : f32
    %107 = vector.broadcast %cst_52 : f32 to vector<1x32xf32>
    %108 = arith.addf %104, %107 : vector<1x32xf32>
    %109 = math.rsqrt %108 : vector<1x32xf32>
    %110 = vector.broadcast %109 : vector<1x32xf32> to vector<2x32xf32>
    %111 = arith.mulf %106, %110 : vector<2x32xf32>
    %112 = vector.broadcast %92 : vector<1x32xf32> to vector<2x32xf32>
    %113 = arith.mulf %111, %112 : vector<2x32xf32>
    %114 = vector.broadcast %93 : vector<1x32xf32> to vector<2x32xf32>
    %115 = arith.addf %113, %114 : vector<2x32xf32>
    %cst_53 = arith.constant 0.000000e+00 : f32
    %116 = vector.broadcast %cst_53 : f32 to vector<2x32xf32>
    %117 = arith.maximumf %115, %116 : vector<2x32xf32>
    %118 = arith.addf %14, %117 : vector<2x32xf32>
    %cst_54 = arith.constant dense<0.000000e+00> : vector<24x32xf32>
    %119 = tpu.matmul %3, %118, %cst_54 {dimension_numbers = #tpu.dot_dimension_numbers<[1], [0], [0], [1], [0, 0, 1, 1], [], []>} : vector<24x2xf32>, vector<2x32xf32>, vector<24x32xf32> -> vector<24x32xf32>
    %120 = arith.addf %51, %119 : vector<24x32xf32>
    %c4_55 = arith.constant 4 : index
    %c0_56 = arith.constant 0 : index
    %121 = vector.load %arg6[%c4_55, %c0_56] : memref<26x32xf32, #tpu.memory_space<vmem>>, vector<1x32xf32>
    %c5_57 = arith.constant 5 : index
    %c0_58 = arith.constant 0 : index
    %122 = vector.load %arg6[%c5_57, %c0_58] : memref<26x32xf32, #tpu.memory_space<vmem>>, vector<1x32xf32>
    %c6 = arith.constant 6 : index
    %c0_59 = arith.constant 0 : index
    %123 = vector.load %arg6[%c6, %c0_59] : memref<26x32xf32, #tpu.memory_space<vmem>>, vector<1x32xf32>
    %c1_60 = arith.constant 1 : index
    %c0_61 = arith.constant 0 : index
    %c0_62 = arith.constant 0 : index
    %124 = vector.load %arg5[%c1_60, %c0_61, %c0_62] : memref<10x32x32xf32, #tpu.memory_space<vmem>>, vector<1x32x32xf32>
    %125 = vector.shape_cast %124 : vector<1x32x32xf32> to vector<32x32xf32>
    %cst_63 = arith.constant dense<0.000000e+00> : vector<24x32xf32>
    %126 = tpu.matmul %120, %125, %cst_63 {dimension_numbers = #tpu.dot_dimension_numbers<[1], [0], [0], [1], [0, 0, 1, 1], [], []>} : vector<24x32xf32>, vector<32x32xf32>, vector<24x32xf32> -> vector<24x32xf32>
    %127 = arith.truncf %126 : vector<24x32xf32> to vector<24x32xbf16>
    %cst_64 = arith.constant dense<0.000000e+00> : vector<24x32xf32>
    %128 = tpu.matmul %0, %127, %cst_64 {dimension_numbers = #tpu.dot_dimension_numbers<[1], [0], [0], [1], [0, 0, 1, 1], [], []>} : vector<24x24xbf16>, vector<24x32xbf16>, vector<24x32xf32> -> vector<24x32xf32>
    %129 = vector.broadcast %121 : vector<1x32xf32> to vector<24x32xf32>
    %130 = arith.addf %128, %129 : vector<24x32xf32>
    %cst_65 = arith.constant dense<0.000000e+00> : vector<32xf32>
    %131 = vector.multi_reduction <add>, %130, %cst_65 [0] : vector<24x32xf32> to vector<32xf32>
    %132 = vector.shape_cast %131 : vector<32xf32> to vector<1x32xf32>
    %cst_66 = arith.constant 2.400000e+01 : f32
    %133 = vector.broadcast %cst_66 : f32 to vector<1x32xf32>
    %134 = arith.divf %132, %133 : vector<1x32xf32>
    %135 = vector.broadcast %134 : vector<1x32xf32> to vector<24x32xf32>
    %136 = arith.subf %130, %135 : vector<24x32xf32>
    %137 = arith.mulf %136, %136 : vector<24x32xf32>
    %cst_67 = arith.constant dense<0.000000e+00> : vector<32xf32>
    %138 = vector.multi_reduction <add>, %137, %cst_67 [0] : vector<24x32xf32> to vector<32xf32>
    %139 = vector.shape_cast %138 : vector<32xf32> to vector<1x32xf32>
    %cst_68 = arith.constant 2.400000e+01 : f32
    %140 = vector.broadcast %cst_68 : f32 to vector<1x32xf32>
    %141 = arith.divf %139, %140 : vector<1x32xf32>
    %142 = vector.broadcast %134 : vector<1x32xf32> to vector<24x32xf32>
    %143 = arith.subf %130, %142 : vector<24x32xf32>
    %cst_69 = arith.constant 9.99999974E-6 : f32
    %144 = vector.broadcast %cst_69 : f32 to vector<1x32xf32>
    %145 = arith.addf %141, %144 : vector<1x32xf32>
    %146 = math.rsqrt %145 : vector<1x32xf32>
    %147 = vector.broadcast %146 : vector<1x32xf32> to vector<24x32xf32>
    %148 = arith.mulf %143, %147 : vector<24x32xf32>
    %149 = vector.broadcast %122 : vector<1x32xf32> to vector<24x32xf32>
    %150 = arith.mulf %148, %149 : vector<24x32xf32>
    %151 = vector.broadcast %123 : vector<1x32xf32> to vector<24x32xf32>
    %152 = arith.addf %150, %151 : vector<24x32xf32>
    %cst_70 = arith.constant 0.000000e+00 : f32
    %153 = vector.broadcast %cst_70 : f32 to vector<24x32xf32>
    %154 = arith.maximumf %152, %153 : vector<24x32xf32>
    %155 = arith.addf %154, %120 : vector<24x32xf32>
    %c6_71 = arith.constant 6 : index
    %c0_72 = arith.constant 0 : index
    %c0_73 = arith.constant 0 : index
    %156 = vector.load %arg5[%c6_71, %c0_72, %c0_73] : memref<10x32x32xf32, #tpu.memory_space<vmem>>, vector<1x32x32xf32>
    %157 = vector.shape_cast %156 : vector<1x32x32xf32> to vector<32x32xf32>
    %c7 = arith.constant 7 : index
    %c0_74 = arith.constant 0 : index
    %c0_75 = arith.constant 0 : index
    %158 = vector.load %arg5[%c7, %c0_74, %c0_75] : memref<10x32x32xf32, #tpu.memory_space<vmem>>, vector<1x32x32xf32>
    %159 = vector.shape_cast %158 : vector<1x32x32xf32> to vector<32x32xf32>
    %cst_76 = arith.constant dense<0.000000e+00> : vector<2x32xf32>
    %160 = tpu.matmul %4, %155, %cst_76 {dimension_numbers = #tpu.dot_dimension_numbers<[1], [0], [0], [1], [0, 0, 1, 1], [], []>} : vector<2x24xf32>, vector<24x32xf32>, vector<2x32xf32> -> vector<2x32xf32>
    %161 = arith.addf %160, %118 : vector<2x32xf32>
    %cst_77 = arith.constant dense<0.000000e+00> : vector<2x32xf32>
    %162 = tpu.matmul %161, %157, %cst_77 {dimension_numbers = #tpu.dot_dimension_numbers<[1], [0], [0], [1], [0, 0, 1, 1], [], []>} : vector<2x32xf32>, vector<32x32xf32>, vector<2x32xf32> -> vector<2x32xf32>
    %c19 = arith.constant 19 : index
    %c0_78 = arith.constant 0 : index
    %163 = vector.load %arg6[%c19, %c0_78] : memref<26x32xf32, #tpu.memory_space<vmem>>, vector<1x32xf32>
    %164 = vector.broadcast %163 : vector<1x32xf32> to vector<2x32xf32>
    %165 = arith.addf %162, %164 : vector<2x32xf32>
    %c20 = arith.constant 20 : index
    %c0_79 = arith.constant 0 : index
    %166 = vector.load %arg6[%c20, %c0_79] : memref<26x32xf32, #tpu.memory_space<vmem>>, vector<1x32xf32>
    %c21 = arith.constant 21 : index
    %c0_80 = arith.constant 0 : index
    %167 = vector.load %arg6[%c21, %c0_80] : memref<26x32xf32, #tpu.memory_space<vmem>>, vector<1x32xf32>
    %cst_81 = arith.constant dense<0.000000e+00> : vector<32xf32>
    %168 = vector.multi_reduction <add>, %165, %cst_81 [0] : vector<2x32xf32> to vector<32xf32>
    %169 = vector.shape_cast %168 : vector<32xf32> to vector<1x32xf32>
    %cst_82 = arith.constant 2.000000e+00 : f32
    %170 = vector.broadcast %cst_82 : f32 to vector<1x32xf32>
    %171 = arith.divf %169, %170 : vector<1x32xf32>
    %172 = vector.broadcast %171 : vector<1x32xf32> to vector<2x32xf32>
    %173 = arith.subf %165, %172 : vector<2x32xf32>
    %174 = arith.mulf %173, %173 : vector<2x32xf32>
    %cst_83 = arith.constant dense<0.000000e+00> : vector<32xf32>
    %175 = vector.multi_reduction <add>, %174, %cst_83 [0] : vector<2x32xf32> to vector<32xf32>
    %176 = vector.shape_cast %175 : vector<32xf32> to vector<1x32xf32>
    %cst_84 = arith.constant 2.000000e+00 : f32
    %177 = vector.broadcast %cst_84 : f32 to vector<1x32xf32>
    %178 = arith.divf %176, %177 : vector<1x32xf32>
    %179 = vector.broadcast %171 : vector<1x32xf32> to vector<2x32xf32>
    %180 = arith.subf %165, %179 : vector<2x32xf32>
    %cst_85 = arith.constant 9.99999974E-6 : f32
    %181 = vector.broadcast %cst_85 : f32 to vector<1x32xf32>
    %182 = arith.addf %178, %181 : vector<1x32xf32>
    %183 = math.rsqrt %182 : vector<1x32xf32>
    %184 = vector.broadcast %183 : vector<1x32xf32> to vector<2x32xf32>
    %185 = arith.mulf %180, %184 : vector<2x32xf32>
    %186 = vector.broadcast %166 : vector<1x32xf32> to vector<2x32xf32>
    %187 = arith.mulf %185, %186 : vector<2x32xf32>
    %188 = vector.broadcast %167 : vector<1x32xf32> to vector<2x32xf32>
    %189 = arith.addf %187, %188 : vector<2x32xf32>
    %cst_86 = arith.constant 0.000000e+00 : f32
    %190 = vector.broadcast %cst_86 : f32 to vector<2x32xf32>
    %191 = arith.maximumf %189, %190 : vector<2x32xf32>
    %cst_87 = arith.constant dense<0.000000e+00> : vector<2x32xf32>
    %192 = tpu.matmul %191, %159, %cst_87 {dimension_numbers = #tpu.dot_dimension_numbers<[1], [0], [0], [1], [0, 0, 1, 1], [], []>} : vector<2x32xf32>, vector<32x32xf32>, vector<2x32xf32> -> vector<2x32xf32>
    %c22 = arith.constant 22 : index
    %c0_88 = arith.constant 0 : index
    %193 = vector.load %arg6[%c22, %c0_88] : memref<26x32xf32, #tpu.memory_space<vmem>>, vector<1x32xf32>
    %194 = vector.broadcast %193 : vector<1x32xf32> to vector<2x32xf32>
    %195 = arith.addf %192, %194 : vector<2x32xf32>
    %c23 = arith.constant 23 : index
    %c0_89 = arith.constant 0 : index
    %196 = vector.load %arg6[%c23, %c0_89] : memref<26x32xf32, #tpu.memory_space<vmem>>, vector<1x32xf32>
    %c24 = arith.constant 24 : index
    %c0_90 = arith.constant 0 : index
    %197 = vector.load %arg6[%c24, %c0_90] : memref<26x32xf32, #tpu.memory_space<vmem>>, vector<1x32xf32>
    %cst_91 = arith.constant dense<0.000000e+00> : vector<32xf32>
    %198 = vector.multi_reduction <add>, %195, %cst_91 [0] : vector<2x32xf32> to vector<32xf32>
    %199 = vector.shape_cast %198 : vector<32xf32> to vector<1x32xf32>
    %cst_92 = arith.constant 2.000000e+00 : f32
    %200 = vector.broadcast %cst_92 : f32 to vector<1x32xf32>
    %201 = arith.divf %199, %200 : vector<1x32xf32>
    %202 = vector.broadcast %201 : vector<1x32xf32> to vector<2x32xf32>
    %203 = arith.subf %195, %202 : vector<2x32xf32>
    %204 = arith.mulf %203, %203 : vector<2x32xf32>
    %cst_93 = arith.constant dense<0.000000e+00> : vector<32xf32>
    %205 = vector.multi_reduction <add>, %204, %cst_93 [0] : vector<2x32xf32> to vector<32xf32>
    %206 = vector.shape_cast %205 : vector<32xf32> to vector<1x32xf32>
    %cst_94 = arith.constant 2.000000e+00 : f32
    %207 = vector.broadcast %cst_94 : f32 to vector<1x32xf32>
    %208 = arith.divf %206, %207 : vector<1x32xf32>
    %209 = vector.broadcast %201 : vector<1x32xf32> to vector<2x32xf32>
    %210 = arith.subf %195, %209 : vector<2x32xf32>
    %cst_95 = arith.constant 9.99999974E-6 : f32
    %211 = vector.broadcast %cst_95 : f32 to vector<1x32xf32>
    %212 = arith.addf %208, %211 : vector<1x32xf32>
    %213 = math.rsqrt %212 : vector<1x32xf32>
    %214 = vector.broadcast %213 : vector<1x32xf32> to vector<2x32xf32>
    %215 = arith.mulf %210, %214 : vector<2x32xf32>
    %216 = vector.broadcast %196 : vector<1x32xf32> to vector<2x32xf32>
    %217 = arith.mulf %215, %216 : vector<2x32xf32>
    %218 = vector.broadcast %197 : vector<1x32xf32> to vector<2x32xf32>
    %219 = arith.addf %217, %218 : vector<2x32xf32>
    %cst_96 = arith.constant 0.000000e+00 : f32
    %220 = vector.broadcast %cst_96 : f32 to vector<2x32xf32>
    %221 = arith.maximumf %219, %220 : vector<2x32xf32>
    %222 = arith.addf %118, %221 : vector<2x32xf32>
    %cst_97 = arith.constant dense<0.000000e+00> : vector<24x32xf32>
    %223 = tpu.matmul %3, %222, %cst_97 {dimension_numbers = #tpu.dot_dimension_numbers<[1], [0], [0], [1], [0, 0, 1, 1], [], []>} : vector<24x2xf32>, vector<2x32xf32>, vector<24x32xf32> -> vector<24x32xf32>
    %224 = arith.addf %155, %223 : vector<24x32xf32>
    %c7_98 = arith.constant 7 : index
    %c0_99 = arith.constant 0 : index
    %225 = vector.load %arg6[%c7_98, %c0_99] : memref<26x32xf32, #tpu.memory_space<vmem>>, vector<1x32xf32>
    %c8 = arith.constant 8 : index
    %c0_100 = arith.constant 0 : index
    %226 = vector.load %arg6[%c8, %c0_100] : memref<26x32xf32, #tpu.memory_space<vmem>>, vector<1x32xf32>
    %c9 = arith.constant 9 : index
    %c0_101 = arith.constant 0 : index
    %227 = vector.load %arg6[%c9, %c0_101] : memref<26x32xf32, #tpu.memory_space<vmem>>, vector<1x32xf32>
    %c2_102 = arith.constant 2 : index
    %c0_103 = arith.constant 0 : index
    %c0_104 = arith.constant 0 : index
    %228 = vector.load %arg5[%c2_102, %c0_103, %c0_104] : memref<10x32x32xf32, #tpu.memory_space<vmem>>, vector<1x32x32xf32>
    %229 = vector.shape_cast %228 : vector<1x32x32xf32> to vector<32x32xf32>
    %cst_105 = arith.constant dense<0.000000e+00> : vector<24x32xf32>
    %230 = tpu.matmul %224, %229, %cst_105 {dimension_numbers = #tpu.dot_dimension_numbers<[1], [0], [0], [1], [0, 0, 1, 1], [], []>} : vector<24x32xf32>, vector<32x32xf32>, vector<24x32xf32> -> vector<24x32xf32>
    %231 = arith.truncf %230 : vector<24x32xf32> to vector<24x32xbf16>
    %cst_106 = arith.constant dense<0.000000e+00> : vector<24x32xf32>
    %232 = tpu.matmul %0, %231, %cst_106 {dimension_numbers = #tpu.dot_dimension_numbers<[1], [0], [0], [1], [0, 0, 1, 1], [], []>} : vector<24x24xbf16>, vector<24x32xbf16>, vector<24x32xf32> -> vector<24x32xf32>
    %233 = vector.broadcast %225 : vector<1x32xf32> to vector<24x32xf32>
    %234 = arith.addf %232, %233 : vector<24x32xf32>
    %cst_107 = arith.constant dense<0.000000e+00> : vector<32xf32>
    %235 = vector.multi_reduction <add>, %234, %cst_107 [0] : vector<24x32xf32> to vector<32xf32>
    %236 = vector.shape_cast %235 : vector<32xf32> to vector<1x32xf32>
    %cst_108 = arith.constant 2.400000e+01 : f32
    %237 = vector.broadcast %cst_108 : f32 to vector<1x32xf32>
    %238 = arith.divf %236, %237 : vector<1x32xf32>
    %239 = vector.broadcast %238 : vector<1x32xf32> to vector<24x32xf32>
    %240 = arith.subf %234, %239 : vector<24x32xf32>
    %241 = arith.mulf %240, %240 : vector<24x32xf32>
    %cst_109 = arith.constant dense<0.000000e+00> : vector<32xf32>
    %242 = vector.multi_reduction <add>, %241, %cst_109 [0] : vector<24x32xf32> to vector<32xf32>
    %243 = vector.shape_cast %242 : vector<32xf32> to vector<1x32xf32>
    %cst_110 = arith.constant 2.400000e+01 : f32
    %244 = vector.broadcast %cst_110 : f32 to vector<1x32xf32>
    %245 = arith.divf %243, %244 : vector<1x32xf32>
    %246 = vector.broadcast %238 : vector<1x32xf32> to vector<24x32xf32>
    %247 = arith.subf %234, %246 : vector<24x32xf32>
    %cst_111 = arith.constant 9.99999974E-6 : f32
    %248 = vector.broadcast %cst_111 : f32 to vector<1x32xf32>
    %249 = arith.addf %245, %248 : vector<1x32xf32>
    %250 = math.rsqrt %249 : vector<1x32xf32>
    %251 = vector.broadcast %250 : vector<1x32xf32> to vector<24x32xf32>
    %252 = arith.mulf %247, %251 : vector<24x32xf32>
    %253 = vector.broadcast %226 : vector<1x32xf32> to vector<24x32xf32>
    %254 = arith.mulf %252, %253 : vector<24x32xf32>
    %255 = vector.broadcast %227 : vector<1x32xf32> to vector<24x32xf32>
    %256 = arith.addf %254, %255 : vector<24x32xf32>
    %cst_112 = arith.constant 0.000000e+00 : f32
    %257 = vector.broadcast %cst_112 : f32 to vector<24x32xf32>
    %258 = arith.maximumf %256, %257 : vector<24x32xf32>
    %259 = arith.addf %258, %224 : vector<24x32xf32>
    %c3_113 = arith.constant 3 : index
    %c0_114 = arith.constant 0 : index
    %c0_115 = arith.constant 0 : index
    %260 = vector.load %arg5[%c3_113, %c0_114, %c0_115] : memref<10x32x32xf32, #tpu.memory_space<vmem>>, vector<1x32x32xf32>
    %261 = vector.shape_cast %260 : vector<1x32x32xf32> to vector<32x32xf32>
    %cst_116 = arith.constant dense<0.000000e+00> : vector<24x32xf32>
    %262 = tpu.matmul %2, %261, %cst_116 {dimension_numbers = #tpu.dot_dimension_numbers<[1], [0], [0], [1], [0, 0, 1, 1], [], []>} : vector<24x32xf32>, vector<32x32xf32>, vector<24x32xf32> -> vector<24x32xf32>
    %263 = arith.truncf %262 : vector<24x32xf32> to vector<24x32xbf16>
    %cst_117 = arith.constant dense<0.000000e+00> : vector<24x32xf32>
    %264 = tpu.matmul %1, %263, %cst_117 {dimension_numbers = #tpu.dot_dimension_numbers<[1], [0], [0], [1], [0, 0, 1, 1], [], []>} : vector<24x24xbf16>, vector<24x32xbf16>, vector<24x32xf32> -> vector<24x32xf32>
    %c10 = arith.constant 10 : index
    %c0_118 = arith.constant 0 : index
    %265 = vector.load %arg6[%c10, %c0_118] : memref<26x32xf32, #tpu.memory_space<vmem>>, vector<1x32xf32>
    %266 = vector.broadcast %265 : vector<1x32xf32> to vector<24x32xf32>
    %267 = arith.addf %264, %266 : vector<24x32xf32>
    %c11 = arith.constant 11 : index
    %c0_119 = arith.constant 0 : index
    %268 = vector.load %arg6[%c11, %c0_119] : memref<26x32xf32, #tpu.memory_space<vmem>>, vector<1x32xf32>
    %c12 = arith.constant 12 : index
    %c0_120 = arith.constant 0 : index
    %269 = vector.load %arg6[%c12, %c0_120] : memref<26x32xf32, #tpu.memory_space<vmem>>, vector<1x32xf32>
    %cst_121 = arith.constant dense<0.000000e+00> : vector<32xf32>
    %270 = vector.multi_reduction <add>, %267, %cst_121 [0] : vector<24x32xf32> to vector<32xf32>
    %271 = vector.shape_cast %270 : vector<32xf32> to vector<1x32xf32>
    %cst_122 = arith.constant 2.400000e+01 : f32
    %272 = vector.broadcast %cst_122 : f32 to vector<1x32xf32>
    %273 = arith.divf %271, %272 : vector<1x32xf32>
    %274 = vector.broadcast %273 : vector<1x32xf32> to vector<24x32xf32>
    %275 = arith.subf %267, %274 : vector<24x32xf32>
    %276 = arith.mulf %275, %275 : vector<24x32xf32>
    %cst_123 = arith.constant dense<0.000000e+00> : vector<32xf32>
    %277 = vector.multi_reduction <add>, %276, %cst_123 [0] : vector<24x32xf32> to vector<32xf32>
    %278 = vector.shape_cast %277 : vector<32xf32> to vector<1x32xf32>
    %cst_124 = arith.constant 2.400000e+01 : f32
    %279 = vector.broadcast %cst_124 : f32 to vector<1x32xf32>
    %280 = arith.divf %278, %279 : vector<1x32xf32>
    %281 = vector.broadcast %273 : vector<1x32xf32> to vector<24x32xf32>
    %282 = arith.subf %267, %281 : vector<24x32xf32>
    %cst_125 = arith.constant 9.99999974E-6 : f32
    %283 = vector.broadcast %cst_125 : f32 to vector<1x32xf32>
    %284 = arith.addf %280, %283 : vector<1x32xf32>
    %285 = math.rsqrt %284 : vector<1x32xf32>
    %286 = vector.broadcast %285 : vector<1x32xf32> to vector<24x32xf32>
    %287 = arith.mulf %282, %286 : vector<24x32xf32>
    %288 = vector.broadcast %268 : vector<1x32xf32> to vector<24x32xf32>
    %289 = arith.mulf %287, %288 : vector<24x32xf32>
    %290 = vector.broadcast %269 : vector<1x32xf32> to vector<24x32xf32>
    %291 = arith.addf %289, %290 : vector<24x32xf32>
    %cst_126 = arith.constant 0.000000e+00 : f32
    %292 = vector.broadcast %cst_126 : f32 to vector<24x32xf32>
    %293 = arith.maximumf %291, %292 : vector<24x32xf32>
    %294 = arith.addf %293, %2 : vector<24x32xf32>
    %cst_127 = arith.constant dense<0.000000e+00> : vector<2x32xf32>
    %295 = tpu.matmul %4, %259, %cst_127 {dimension_numbers = #tpu.dot_dimension_numbers<[1], [0], [0], [1], [0, 0, 1, 1], [], []>} : vector<2x24xf32>, vector<24x32xf32>, vector<2x32xf32> -> vector<2x32xf32>
    %296 = vector.broadcast %10 : vector<2x1xf32> to vector<2x32xf32>
    %297 = arith.mulf %296, %295 : vector<2x32xf32>
    %cst_128 = arith.constant dense<0.000000e+00> : vector<2x32xf32>
    %298 = tpu.matmul %4, %294, %cst_128 {dimension_numbers = #tpu.dot_dimension_numbers<[1], [0], [0], [1], [0, 0, 1, 1], [], []>} : vector<2x24xf32>, vector<24x32xf32>, vector<2x32xf32> -> vector<2x32xf32>
    %299 = vector.broadcast %10 : vector<2x1xf32> to vector<2x32xf32>
    %300 = arith.mulf %299, %298 : vector<2x32xf32>
    %c8_129 = arith.constant 8 : index
    %c0_130 = arith.constant 0 : index
    %c0_131 = arith.constant 0 : index
    %301 = vector.load %arg5[%c8_129, %c0_130, %c0_131] : memref<10x32x32xf32, #tpu.memory_space<vmem>>, vector<1x32x32xf32>
    %302 = vector.shape_cast %301 : vector<1x32x32xf32> to vector<32x32xf32>
    %cst_132 = arith.constant dense<0.000000e+00> : vector<2x32xf32>
    %303 = tpu.matmul %297, %302, %cst_132 {dimension_numbers = #tpu.dot_dimension_numbers<[1], [0], [0], [1], [0, 0, 1, 1], [], []>} : vector<2x32xf32>, vector<32x32xf32>, vector<2x32xf32> -> vector<2x32xf32>
    %c9_133 = arith.constant 9 : index
    %c0_134 = arith.constant 0 : index
    %c0_135 = arith.constant 0 : index
    %304 = vector.load %arg5[%c9_133, %c0_134, %c0_135] : memref<10x32x32xf32, #tpu.memory_space<vmem>>, vector<1x32x32xf32>
    %305 = vector.shape_cast %304 : vector<1x32x32xf32> to vector<32x32xf32>
    %cst_136 = arith.constant dense<0.000000e+00> : vector<2x32xf32>
    %306 = tpu.matmul %300, %305, %cst_136 {dimension_numbers = #tpu.dot_dimension_numbers<[1], [0], [0], [1], [0, 0, 1, 1], [], []>} : vector<2x32xf32>, vector<32x32xf32>, vector<2x32xf32> -> vector<2x32xf32>
    %307 = arith.addf %303, %306 : vector<2x32xf32>
    %c25 = arith.constant 25 : index
    %c0_137 = arith.constant 0 : index
    %308 = vector.load %arg6[%c25, %c0_137] : memref<26x32xf32, #tpu.memory_space<vmem>>, vector<1x32xf32>
    %309 = vector.broadcast %308 : vector<1x32xf32> to vector<2x32xf32>
    %310 = arith.addf %307, %309 : vector<2x32xf32>
    %311 = vector.extract_strided_slice %310 {offsets = [0, 0], sizes = [2, 8], strides = [1, 1]} : vector<2x32xf32> to vector<2x8xf32>
    %c0_138 = arith.constant 0 : index
    %c0_139 = arith.constant 0 : index
    %312 = vector.load %arg7[%c0_138, %c0_139] : memref<2x8xf32, #tpu.memory_space<vmem>>, vector<2x8xf32>
    tpu.vector_store %arg7[%c0_138, %c0_139], %311 {strides = array<i32>} : memref<2x8xf32, #tpu.memory_space<vmem>>, vector<2x8xf32>,
    return
  }
}

</mosaic_0001>

<llo_original>
// kernel: mul.1
$region0: #{mul.1}
  #allocation0 [shape = 's32[1]{0}', space=sflag, size = 0x4, scoped, tag = 'scoped memory for mul.1']
  %s0 = inlined_call_operand.vmem [shape: f32[48], index: 0, kind: input, shape index: {}]
  %s1 = inlined_call_operand.vmem [shape: f32[48], index: 1, kind: input, shape index: {}]
  %s2 = inlined_call_operand.vmem [shape: f32[48], index: 2, kind: output, shape index: {}]
  %v3 = vld [vmem:[%s0] sm:$0x1]
  %v4 = vld [vmem:[%s1] sm:$0x1]
  %5 = xla_tuple %v3, %v4
  %6 = xla_tuple %5
  %v7 = vmul.f32 %v3, %v4
  %8 = xla_tuple %v7
  %9 = vst [vmem:[%s2] sm:$0x1] %v7

// kernel: forward.1
$region0: #{forward.1}
  #allocation0 [shape = 'u32[]', space=smem, size = 0x4, offset = 0x4, fixed_abs, tag = 'smem constant byte address 0x4 - core index']
  #allocation1 [shape = 'u32[144,128]{1,0:T(1,128)}', space=vmem, size = 0x12000, scoped, tag = 'internal scratch']
  %s0 = inlined_call_operand.hbm [shape: bf16[24,24], index: 0, kind: input, shape index: {}]
  %s1 = inlined_call_operand.hbm [shape: bf16[24,24], index: 1, kind: input, shape index: {}]
  %s2 = inlined_call_operand.hbm [shape: f32[24,32], index: 2, kind: input, shape index: {}]
  %s3 = inlined_call_operand.hbm [shape: f32[24,2], index: 3, kind: input, shape index: {}]
  %s4 = inlined_call_operand.hbm [shape: f32[2,24], index: 4, kind: input, shape index: {}]
  %s5 = inlined_call_operand.hbm [shape: f32[10,32,32], index: 5, kind: input, shape index: {}]
  %s6 = inlined_call_operand.hbm [shape: f32[26,32], index: 6, kind: input, shape index: {}]
  %s7 = inlined_call_operand.hbm [shape: f32[2,8], index: 7, kind: output, shape index: {}]
  %s8 = sld [smem:[#allocation0]]
  $region66: #{forward.1} parent=0
    _
  %s10 = ssub.s32 1, %s8
  %s11 = scalar_select 0, %s10, %s8
  $region1: #{forward.1} parent=0
    #allocation2 [shape = 'u8[6144]{0}', space=vmem, size = 0x1800, scoped, tag = 'input window, operand 0, single buffered']
    #allocation3 [shape = 's32[1]{0}', space=sflag, size = 0x4, scoped, tag = 'scoped memory for forward.1']
    #allocation4 [shape = 's32[1]{0}', space=sflag, size = 0x4, scoped, tag = 'scoped memory for forward.1']
    #allocation5 [shape = 'u8[6144]{0}', space=vmem, size = 0x1800, scoped, tag = 'input window, operand 1, single buffered']
    #allocation6 [shape = 's32[1]{0}', space=sflag, size = 0x4, scoped, tag = 'scoped memory for forward.1']
    #allocation7 [shape = 'u8[12288]{0}', space=vmem, size = 0x3000, scoped, tag = 'input window, operand 2, single buffered']
    #allocation8 [shape = 'u8[12288]{0}', space=vmem, size = 0x3000, scoped, tag = 'input window, operand 3, single buffered']
    #allocation9 [shape = 's32[1]{0}', space=sflag, size = 0x4, scoped, tag = 'scoped memory for forward.1']
    #allocation10 [shape = 'u8[1024]{0}', space=vmem, size = 0x400, scoped, tag = 'input window, operand 4, single buffered']
    #allocation11 [shape = 'u8[163840]{0}', space=vmem, size = 0x28000, scoped, tag = 'input window, operand 5, single buffered']
    #allocation12 [shape = 's32[1]{0}', space=sflag, size = 0x4, scoped, tag = 'scoped memory for forward.1']
    #allocation13 [shape = 'u8[16384]{0}', space=vmem, size = 0x4000, scoped, tag = 'input window, operand 6, single buffered']
    #allocation14 [shape = 'u8[1024]{0}', space=vmem, size = 0x400, scoped, tag = 'output window, operand 0, single buffered']
    %12 = vsyncpa [#allocation3], 0
    %13 = vsyncpa [#allocation6], 0
    %14 = vsyncpa [#allocation9], 0
    %15 = vsyncpa [#allocation12], 0
    %16 = vsyncpa [#allocation4], 0
    // Predicated region
    $region2: #{forward.1} parent=1 // pred_check
      _
    $region3: #{forward.1} parent=1 // pred_check_branch
      %18 = sbr.rel (0) target = $region5
    $region4: #{forward.1} parent=1 // pred_region
      %s20 = ssub.s32 192, 192
      %21 = vsyncadd [#allocation3], %s20
      %s22 = sshll.u32 [#allocation2], 4
      %s23 = int_to_ptr.vmem [resolvable:$true] %s22
      %28 = dma.hbm_to_vmem [thread:$0]  %s0, 192, %s23, [#allocation3], 64, 64, 4
    $region5: #{forward.1} parent=1 // pred_fallthru
      _
    // Predicated region
    $region6: #{forward.1} parent=1 // pred_check
      _
    $region7: #{forward.1} parent=1 // pred_check_branch
      %30 = sbr.rel (0) target = $region9
    $region8: #{forward.1} parent=1 // pred_region
      %s32 = ssub.s32 192, 192
      %33 = vsyncadd [#allocation6], %s32
      %s34 = sshll.u32 [#allocation5], 4
      %s35 = int_to_ptr.vmem [resolvable:$true] %s34
      %40 = dma.hbm_to_vmem [thread:$0]  %s1, 192, %s35, [#allocation6], 64, 64, 4
    $region9: #{forward.1} parent=1 // pred_fallthru
      _
    // Predicated region
    $region10: #{forward.1} parent=1 // pred_check
      _
    $region11: #{forward.1} parent=1 // pred_check_branch
      %42 = sbr.rel (0) target = $region13
    $region12: #{forward.1} parent=1 // pred_region
      %s44 = ssub.s32 384, 384
      %45 = vsyncadd [#allocation6], %s44
      %s46 = sshll.u32 [#allocation7], 4
      %s47 = int_to_ptr.vmem [resolvable:$true] %s46
      %52 = dma.hbm_to_vmem [thread:$0]  %s2, 384, %s47, [#allocation6], 128, 128, 8
    $region13: #{forward.1} parent=1 // pred_fallthru
      _
    // Predicated region
    $region14: #{forward.1} parent=1 // pred_check
      _
    $region15: #{forward.1} parent=1 // pred_check_branch
      %54 = sbr.rel (0) target = $region17
    $region16: #{forward.1} parent=1 // pred_region
      %s56 = ssub.s32 384, 384
      %57 = vsyncadd [#allocation9], %s56
      %s58 = sshll.u32 [#allocation8], 4
      %s59 = int_to_ptr.vmem [resolvable:$true] %s58
      %64 = dma.hbm_to_vmem [thread:$0]  %s3, 384, %s59, [#allocation9], 128, 128, 8
    $region17: #{forward.1} parent=1 // pred_fallthru
      _
    // Predicated region
    $region18: #{forward.1} parent=1 // pred_check
      _
    $region19: #{forward.1} parent=1 // pred_check_branch
      %66 = sbr.rel (0) target = $region21
    $region20: #{forward.1} parent=1 // pred_region
      %s68 = ssub.s32 32, 32
      %69 = vsyncadd [#allocation9], %s68
      %s71 = sshll.u32 [#allocation10], 4
      %s72 = int_to_ptr.vmem [resolvable:$true] %s71
      %74 = dma.hbm_to_vmem [thread:$0]  %s4, 32, %s72, [#allocation9]
    $region21: #{forward.1} parent=1 // pred_fallthru
      _
    // Predicated region
    $region22: #{forward.1} parent=1 // pred_check
      _
    $region23: #{forward.1} parent=1 // pred_check_branch
      %76 = sbr.rel (0) target = $region25
    $region24: #{forward.1} parent=1 // pred_region
      %s78 = ssub.s32 5120, 5120
      %79 = vsyncadd [#allocation12], %s78
      %s80 = sshll.u32 [#allocation11], 4
      %s81 = int_to_ptr.vmem [resolvable:$true] %s80
      %86 = dma.hbm_to_vmem [thread:$0]  %s5, 5120, %s81, [#allocation12], 128, 128, 8
    $region25: #{forward.1} parent=1 // pred_fallthru
      _
    // Predicated region
    $region26: #{forward.1} parent=1 // pred_check
      _
    $region27: #{forward.1} parent=1 // pred_check_branch
      %88 = sbr.rel (0) target = $region29
    $region28: #{forward.1} parent=1 // pred_region
      %s90 = ssub.s32 512, 512
      %91 = vsyncadd [#allocation12], %s90
      %s92 = sshll.u32 [#allocation13], 4
      %s93 = int_to_ptr.vmem [resolvable:$true] %s92
      %98 = dma.hbm_to_vmem [thread:$0]  %s6, 512, %s93, [#allocation12], 128, 128, 8
    $region29: #{forward.1} parent=1 // pred_fallthru
      _
    // Predicated region
    $region30: #{forward.1} parent=1 // pred_check
      _
    $region31: #{forward.1} parent=1 // pred_check_branch
      %100 = sbr.rel (0) target = $region33
    $region32: #{forward.1} parent=1 // pred_region
      %101 = dma.done [#allocation3], 192
    $region33: #{forward.1} parent=1 // pred_fallthru
      _
    // Predicated region
    $region34: #{forward.1} parent=1 // pred_check
      _
    $region35: #{forward.1} parent=1 // pred_check_branch
      %103 = sbr.rel (0) target = $region37
    $region36: #{forward.1} parent=1 // pred_region
      %104 = dma.done [#allocation6], 192
    $region37: #{forward.1} parent=1 // pred_fallthru
      _
    // Predicated region
    $region38: #{forward.1} parent=1 // pred_check
      _
    $region39: #{forward.1} parent=1 // pred_check_branch
      %106 = sbr.rel (0) target = $region41
    $region40: #{forward.1} parent=1 // pred_region
      %107 = dma.done [#allocation6], 384
    $region41: #{forward.1} parent=1 // pred_fallthru
      _
    // Predicated region
    $region42: #{forward.1} parent=1 // pred_check
      _
    $region43: #{forward.1} parent=1 // pred_check_branch
      %109 = sbr.rel (0) target = $region45
    $region44: #{forward.1} parent=1 // pred_region
      %110 = dma.done [#allocation9], 384
    $region45: #{forward.1} parent=1 // pred_fallthru
      _
    // Predicated region
    $region46: #{forward.1} parent=1 // pred_check
      _
    $region47: #{forward.1} parent=1 // pred_check_branch
      %112 = sbr.rel (0) target = $region49
    $region48: #{forward.1} parent=1 // pred_region
      %113 = dma.done [#allocation9], 32
    $region49: #{forward.1} parent=1 // pred_fallthru
      _
    // Predicated region
    $region50: #{forward.1} parent=1 // pred_check
      _
    $region51: #{forward.1} parent=1 // pred_check_branch
      %115 = sbr.rel (0) target = $region53
    $region52: #{forward.1} parent=1 // pred_region
      %116 = dma.done [#allocation12], 5120
    $region53: #{forward.1} parent=1 // pred_fallthru
      _
    // Predicated region
    $region54: #{forward.1} parent=1 // pred_check
      _
    $region55: #{forward.1} parent=1 // pred_check_branch
      %118 = sbr.rel (0) target = $region57
    $region56: #{forward.1} parent=1 // pred_region
      %119 = dma.done [#allocation12], 512
    $region57: #{forward.1} parent=1 // pred_fallthru
      _
    %v121 = vld [vmem:[#allocation2] sm:$0xf]
    %v122 = vld [vmem:[#allocation2 + $0x4] sm:$0xf]
    %v123 = vld [vmem:[#allocation2 + $0x8] sm:$0xf]
    %v124 = vld [vmem:[#allocation5] sm:$0xf]
    %v125 = vld [vmem:[#allocation5 + $0x4] sm:$0xf]
    %v126 = vld [vmem:[#allocation5 + $0x8] sm:$0xf]
    %v127 = vld [vmem:[#allocation7] sm:$0xff]
    %v128 = vld [vmem:[#allocation7 + $0x8] sm:$0xff]
    %v129 = vld [vmem:[#allocation7 + $0x10] sm:$0xff]
    %v130 = vld [vmem:[#allocation8] sm:$0xff]
    %v131 = vld [vmem:[#allocation8 + $0x8] sm:$0xff]
    %v132 = vld [vmem:[#allocation8 + $0x10] sm:$0xff]
    %v133 = vld [vmem:[#allocation10] sm:$0x3]
    %vm134 = vcmask 189440
    %v135 = vsel %vm134, %v133, 0.0
    %136 = vadd.xlane.f32.xlu0 %v135
    %v137 = vpop.xlane.xlu0 %136
    %v138 = vmax.f32 %v137, 1.0
    %v139 = vrcp.pop %v138
    %v140 = vmul.f32 1.0, %v139
    %v141 = vld [vmem:[#allocation13] sm:$0x1]
    %v142 = vlaneseq
    %v143 = vshrl.u32 %v142, 7
    %v144 = vsub.s32 0, %v143
    %v145 = vrot.slane %v141, %v144
    %v146 = vadd.f32 %v145, 0.0
    %vm147 = vcmask 15360
    %v149 = vsel %vm147, %v130, 0
    %v152 = vsel %vm147, %v131, 0
    %v155 = vsel %vm147, %v132, 0
    %vm157 = vcmask 1041408
    %v159 = vsel %vm157, %v146, 0
    %161 = vmatprep.subr.mxu0 0.0
    %162 = vmatpush1.msra.mxu0 %v159
    %163 = vmatprep.subr.mxu0 0.0
    %164 = vmatpush1.msra.mxu0 0.0
    %165 = vmatprep.subr.mxu0 0.0
    %166 = vmatpush1.msra.mxu0 0.0
    %167 = vmatprep.subr.mxu0 0.0
    %168 = vmatpush1.msra.mxu0 0.0
    %169 = vmatprep.subr.mxu0 0.0
    %170 = vmatpush1.msra.mxu0 0.0
    %171 = vmatprep.subr.mxu0 0.0
    %172 = vmatpush1.msra.mxu0 0.0
    %173 = vmatprep.subr.mxu0 0.0
    %174 = vmatpush1.msra.mxu0 0.0
    %175 = vmatprep.subr.mxu0 0.0
    %176 = vmatpush1.msra.mxu0 0.0
    %177 = vmatprep.subr.mxu0 0.0
    %178 = vmatpush1.msra.mxu0 0.0
    %179 = vmatprep.subr.mxu0 0.0
    %180 = vmatpush1.msra.mxu0 0.0
    %181 = vmatprep.subr.mxu0 0.0
    %182 = vmatpush1.msra.mxu0 0.0
    %183 = vmatprep.subr.mxu0 0.0
    %184 = vmatpush1.msra.mxu0 0.0
    %185 = vmatprep.subr.mxu0 0.0
    %186 = vmatpush1.msra.mxu0 0.0
    %187 = vmatprep.subr.mxu0 0.0
    %188 = vmatpush1.msra.mxu0 0.0
    %189 = vmatprep.subr.mxu0 0.0
    %190 = vmatpush1.msra.mxu0 0.0
    %191 = vmatprep.subr.mxu0 0.0
    %192 = vmatpush1.msra.mxu0 0.0
    %193 = vmatprep.subr.mxu0 0.0
    %194 = vmatpush1.msra.mxu0 0.0
    %195 = vmatprep.subr.mxu0 0.0
    %196 = vmatpush1.msra.mxu0 0.0
    %197 = vmatprep.subr.mxu0 0.0
    %198 = vmatpush1.msra.mxu0 0.0
    %199 = vmatprep.subr.mxu0 0.0
    %200 = vmatpush1.msra.mxu0 0.0
    %201 = vmatprep.subr.mxu0 0.0
    %202 = vmatpush1.msra.mxu0 0.0
    %203 = vmatprep.subr.mxu0 0.0
    %204 = vmatpush1.msra.mxu0 0.0
    %205 = vmatprep.subr.mxu0 0.0
    %206 = vmatpush1.msra.mxu0 0.0
    %207 = vmatprep.subr.mxu0 0.0
    %208 = vmatpush1.msra.mxu0 0.0
    %209 = vmatprep.subr.mxu0 0.0
    %210 = vmatpush1.msra.mxu0 0.0
    %211 = vmatprep.subr.mxu0 0.0
    %212 = vmatpush1.msra.mxu0 0.0
    %213 = vmatprep.subr.mxu0 0.0
    %214 = vmatpush1.msra.mxu0 0.0
    %215 = vmatprep.subr.mxu0 0.0
    %216 = vmatpush1.msra.mxu0 0.0
    %217 = vmatprep.subr.mxu0 0.0
    %218 = vmatpush1.msra.mxu0 0.0
    %219 = vmatprep.subr.mxu0 0.0
    %220 = vmatpush1.msra.mxu0 0.0
    %221 = vmatprep.subr.mxu0 0.0
    %222 = vmatpush1.msra.mxu0 0.0
    %223 = vmatprep.subr.mxu0 0.0
    %224 = vmatpush1.msra.mxu0 0.0
    %225 = vmatprep.mubr.f32.mxu0 0.0
    %226 = vmatmul.mubr.f32.gmra.mrb[0].mxu0 %v149
    %v227 = vpop.f32.mrb[0].mxu0
    %v228 = vadd.f32 0.0, %v227
    %v229 = vpop.f32.mrb[0].mxu0
    %230 = vmatprep.mubr.f32.mxu0 0.0
    %231 = vmatmul.mubr.f32.gmra.mrb[0].mxu0 %v152
    %v232 = vpop.f32.mrb[0].mxu0
    %v233 = vadd.f32 0.0, %v232
    %v234 = vpop.f32.mrb[0].mxu0
    %235 = vmatprep.mubr.f32.mxu0 0.0
    %236 = vmatmul.mubr.f32.gmra.mrb[0].mxu0 %v155
    %v237 = vpop.f32.mrb[0].mxu0
    %v238 = vadd.f32 0.0, %v237
    %v239 = vpop.f32.mrb[0].mxu0
    %240 = vdwg.mxu0
    %v241 = vadd.f32 %v127, %v228
    %v242 = vadd.f32 %v128, %v233
    %v243 = vadd.f32 %v129, %v238
    %v244 = vld [vmem:[#allocation13 + $0x1] sm:$0x1]
    %v245 = vld [vmem:[#allocation13 + $0x2] sm:$0x1]
    %v246 = vld [vmem:[#allocation13 + $0x3] sm:$0x1]
    %v247 = vld [vmem:[#allocation11] sm:$0xff]
    %v248 = vld [vmem:[#allocation11 + $0x8] sm:$0xff]
    %v249 = vld [vmem:[#allocation11 + $0x10] sm:$0xff]
    %v250 = vld [vmem:[#allocation11 + $0x18] sm:$0xff]
    %vm251 = vcmask 261120
    %v253 = vsel %vm251, %v241, 0
    %v256 = vsel %vm251, %v242, 0
    %v259 = vsel %vm251, %v243, 0
    %261 = vmatprep.subr.mxu0 0.0
    %262 = vmatpush1.msra.mxu0 %v247
    %263 = vmatprep.subr.mxu0 0.0
    %264 = vmatpush1.msra.mxu0 %v248
    %265 = vmatprep.subr.mxu0 0.0
    %266 = vmatpush1.msra.mxu0 %v249
    %267 = vmatprep.subr.mxu0 0.0
    %268 = vmatpush1.msra.mxu0 %v250
    %269 = vmatprep.subr.mxu0 0.0
    %270 = vmatpush1.msra.mxu0 0.0
    %271 = vmatprep.subr.mxu0 0.0
    %272 = vmatpush1.msra.mxu0 0.0
    %273 = vmatprep.subr.mxu0 0.0
    %274 = vmatpush1.msra.mxu0 0.0
    %275 = vmatprep.subr.mxu0 0.0
    %276 = vmatpush1.msra.mxu0 0.0
    %277 = vmatprep.subr.mxu0 0.0
    %278 = vmatpush1.msra.mxu0 0.0
    %279 = vmatprep.subr.mxu0 0.0
    %280 = vmatpush1.msra.mxu0 0.0
    %281 = vmatprep.subr.mxu0 0.0
    %282 = vmatpush1.msra.mxu0 0.0
    %283 = vmatprep.subr.mxu0 0.0
    %284 = vmatpush1.msra.mxu0 0.0
    %285 = vmatprep.subr.mxu0 0.0
    %286 = vmatpush1.msra.mxu0 0.0
    %287 = vmatprep.subr.mxu0 0.0
    %288 = vmatpush1.msra.mxu0 0.0
    %289 = vmatprep.subr.mxu0 0.0
    %290 = vmatpush1.msra.mxu0 0.0
    %291 = vmatprep.subr.mxu0 0.0
    %292 = vmatpush1.msra.mxu0 0.0
    %293 = vmatprep.subr.mxu0 0.0
    %294 = vmatpush1.msra.mxu0 0.0
    %295 = vmatprep.subr.mxu0 0.0
    %296 = vmatpush1.msra.mxu0 0.0
    %297 = vmatprep.subr.mxu0 0.0
    %298 = vmatpush1.msra.mxu0 0.0
    %299 = vmatprep.subr.mxu0 0.0
    %300 = vmatpush1.msra.mxu0 0.0
    %301 = vmatprep.subr.mxu0 0.0
    %302 = vmatpush1.msra.mxu0 0.0
    %303 = vmatprep.subr.mxu0 0.0
    %304 = vmatpush1.msra.mxu0 0.0
    %305 = vmatprep.subr.mxu0 0.0
    %306 = vmatpush1.msra.mxu0 0.0
    %307 = vmatprep.subr.mxu0 0.0
    %308 = vmatpush1.msra.mxu0 0.0
    %309 = vmatprep.subr.mxu0 0.0
    %310 = vmatpush1.msra.mxu0 0.0
    %311 = vmatprep.subr.mxu0 0.0
    %312 = vmatpush1.msra.mxu0 0.0
    %313 = vmatprep.subr.mxu0 0.0
    %314 = vmatpush1.msra.mxu0 0.0
    %315 = vmatprep.subr.mxu0 0.0
    %316 = vmatpush1.msra.mxu0 0.0
    %317 = vmatprep.subr.mxu0 0.0
    %318 = vmatpush1.msra.mxu0 0.0
    %319 = vmatprep.subr.mxu0 0.0
    %320 = vmatpush1.msra.mxu0 0.0
    %321 = vmatprep.subr.mxu0 0.0
    %322 = vmatpush1.msra.mxu0 0.0
    %323 = vmatprep.subr.mxu0 0.0
    %324 = vmatpush1.msra.mxu0 0.0
    %325 = vmatprep.mubr.f32.mxu0 0.0
    %326 = vmatmul.mubr.f32.gmra.mrb[0].mxu0 %v253
    %v327 = vpop.f32.mrb[0].mxu0
    %v328 = vadd.f32 0.0, %v327
    %v329 = vpop.f32.mrb[0].mxu0
    %330 = vmatprep.mubr.f32.mxu0 0.0
    %331 = vmatmul.mubr.f32.gmra.mrb[0].mxu0 %v256
    %v332 = vpop.f32.mrb[0].mxu0
    %v333 = vadd.f32 0.0, %v332
    %v334 = vpop.f32.mrb[0].mxu0
    %335 = vmatprep.mubr.f32.mxu0 0.0
    %336 = vmatmul.mubr.f32.gmra.mrb[0].mxu0 %v259
    %v337 = vpop.f32.mrb[0].mxu0
    %v338 = vadd.f32 0.0, %v337
    %v339 = vpop.f32.mrb[0].mxu0
    %340 = vdwg.mxu0
    %v341 = vpack.c.bf16 %v333, %v328
    %v342 = vpack.c.bf16 %v338, %v338
    %v343 = vlaneseq
    %v344 = vshrl.u32 %v343, 7
    %v345 = vsub.s32 0, %v344
    %v346 = vrot.slane %v244, %v345
    %v350 = vunpack.c.l.b16 %v121
    %v351 = vunpack.c.l.b16 %v122
    %v352 = vunpack.c.l.b16 %v123
    %v353 = vpack.c.b16 %v351, %v350
    %v354 = vpack.c.b16 %v352, %v352
    %vm355 = vcmask 195584
    %v357 = vsel %vm355, %v353, 0
    %v360 = vsel %vm355, %v354, 0
    %vm362 = vcmask 1043456
    %v364 = vsel %vm362, %v342, 0
    %366 = vmatprep.subr.bf16.mxu0 0
    %367 = vmatpush1.bf16.msra.mxu0 %v341
    %368 = vmatprep.subr.bf16.mxu0 0
    %369 = vmatpush1.bf16.msra.mxu0 %v364
    %370 = vmatprep.subr.bf16.mxu0 0
    %371 = vmatpush1.bf16.msra.mxu0 0
    %372 = vmatprep.subr.bf16.mxu0 0
    %373 = vmatpush1.bf16.msra.mxu0 0
    %374 = vmatprep.subr.bf16.mxu0 0
    %375 = vmatpush1.bf16.msra.mxu0 0
    %376 = vmatprep.subr.bf16.mxu0 0
    %377 = vmatpush1.bf16.msra.mxu0 0
    %378 = vmatprep.subr.bf16.mxu0 0
    %379 = vmatpush1.bf16.msra.mxu0 0
    %380 = vmatprep.subr.bf16.mxu0 0
    %381 = vmatpush1.bf16.msra.mxu0 0
    %382 = vmatprep.subr.bf16.mxu0 0
    %383 = vmatpush1.bf16.msra.mxu0 0
    %384 = vmatprep.subr.bf16.mxu0 0
    %385 = vmatpush1.bf16.msra.mxu0 0
    %386 = vmatprep.subr.bf16.mxu0 0
    %387 = vmatpush1.bf16.msra.mxu0 0
    %388 = vmatprep.subr.bf16.mxu0 0
    %389 = vmatpush1.bf16.msra.mxu0 0
    %390 = vmatprep.subr.bf16.mxu0 0
    %391 = vmatpush1.bf16.msra.mxu0 0
    %392 = vmatprep.subr.bf16.mxu0 0
    %393 = vmatpush1.bf16.msra.mxu0 0
    %394 = vmatprep.subr.bf16.mxu0 0
    %395 = vmatpush1.bf16.msra.mxu0 0
    %396 = vmatprep.subr.bf16.mxu0 0
    %397 = vmatpush1.bf16.msra.mxu0 0
    %398 = vmatprep.mubr.bf16.mxu0 0
    %399 = vmatmul.mubr.bf16.gmra.mrb[0].mxu0 %v357
    %v400 = vpop.f32.mrb[0].mxu0
    %v401 = vadd.f32 %v346, %v400
    %v402 = vpop.f32.mrb[0].mxu0
    %v403 = vpop.f32.mrb[0].mxu0
    %v404 = vadd.f32 %v346, %v403
    %v405 = vpop.f32.mrb[0].mxu0
    %406 = vmatprep.mubr.bf16.mxu0 0
    %407 = vmatmul.mubr.bf16.gmra.mrb[0].mxu0 %v360
    %v408 = vpop.f32.mrb[0].mxu0
    %v409 = vadd.f32 %v346, %v408
    %v410 = vpop.f32.mrb[0].mxu0
    %v411 = vpop.f32.mrb[0].mxu0
    %v412 = vpop.f32.mrb[0].mxu0
    %413 = vdwg.mxu0
    %v414 = vsel %vm251, %v401, 0.0
    %v415 = vsel %vm251, %v404, 0.0
    %v416 = vadd.f32 %v414, %v415
    %v417 = vsel %vm251, %v409, 0.0
    %v418 = vadd.f32 %v416, %v417
    %v419 = vrot.slane %v418, 4
    %v420 = vadd.f32 %v418, %v419
    %v421 = vrot.slane %v420, 2
    %v422 = vadd.f32 %v420, %v421
    %v423 = vrot.slane %v422, 1
    %v424 = vadd.f32 %v422, %v423
    %v425 = vrcp.pop 24.0
    %v426 = vmul.f32 %v424, %v425
    %v427 = vsub.f32 %v401, %v426
    %v428 = vsub.f32 %v404, %v426
    %v429 = vsub.f32 %v409, %v426
    %v430 = vmul.f32 %v427, %v427
    %v431 = vmul.f32 %v428, %v428
    %v432 = vmul.f32 %v429, %v429
    %v433 = vsel %vm251, %v430, 0.0
    %v434 = vsel %vm251, %v431, 0.0
    %v435 = vadd.f32 %v433, %v434
    %v436 = vsel %vm251, %v432, 0.0
    %v437 = vadd.f32 %v435, %v436
    %v438 = vrot.slane %v437, 4
    %v439 = vadd.f32 %v437, %v438
    %v440 = vrot.slane %v439, 2
    %v441 = vadd.f32 %v439, %v440
    %v442 = vrot.slane %v441, 1
    %v443 = vadd.f32 %v441, %v442
    %v444 = vmul.f32 %v443, %v425
    %v445 = vadd.f32 %v444, 1e-05
    %v446 = vrsqrt.pop %v445
    %v447 = vmul.f32 %v427, %v446
    %v448 = vmul.f32 %v428, %v446
    %v449 = vmul.f32 %v429, %v446
    %v450 = vlaneseq
    %v451 = vshrl.u32 %v450, 7
    %v452 = vsub.s32 0, %v451
    %v453 = vrot.slane %v245, %v452
    %v454 = vmul.f32 %v447, %v453
    %v455 = vmul.f32 %v448, %v453
    %v456 = vmul.f32 %v449, %v453
    %v457 = vlaneseq
    %v458 = vshrl.u32 %v457, 7
    %v459 = vsub.s32 0, %v458
    %v460 = vrot.slane %v246, %v459
    %v461 = vadd.f32 %v454, %v460
    %v462 = vadd.f32 %v455, %v460
    %v463 = vadd.f32 %v456, %v460
    %v464 = vmax.f32 %v461, 0.0
    %v465 = vmax.f32 %v462, 0.0
    %v466 = vmax.f32 %v463, 0.0
    %v467 = vadd.f32 %v464, %v241
    %v468 = vadd.f32 %v465, %v242
    %v469 = vadd.f32 %v466, %v243
    %s470 = scalar_lea.vmem [#allocation11], 128
    %v471 = vld [vmem:[%s470] sm:$0xff]
    %v472 = vld [vmem:[%s470 + $0x8] sm:$0xff]
    %v473 = vld [vmem:[%s470 + $0x10] sm:$0xff]
    %v474 = vld [vmem:[%s470 + $0x18] sm:$0xff]
    %s475 = scalar_lea.vmem [#allocation11], 160
    %v476 = vld [vmem:[%s475] sm:$0xff]
    %v477 = vld [vmem:[%s475 + $0x8] sm:$0xff]
    %v478 = vld [vmem:[%s475 + $0x10] sm:$0xff]
    %v479 = vld [vmem:[%s475 + $0x18] sm:$0xff]
    %v481 = vsel %vm355, %v133, 0
    %483 = vmatprep.subr.mxu0 0.0
    %484 = vmatpush1.msra.mxu0 %v467
    %485 = vmatprep.subr.mxu0 0.0
    %486 = vmatpush1.msra.mxu0 %v468
    %487 = vmatprep.subr.mxu0 0.0
    %488 = vmatpush1.msra.mxu0 %v469
    %489 = vmatprep.subr.mxu0 0.0
    %490 = vmatpush1.msra.mxu0 0.0
    %491 = vmatprep.subr.mxu0 0.0
    %492 = vmatpush1.msra.mxu0 0.0
    %493 = vmatprep.subr.mxu0 0.0
    %494 = vmatpush1.msra.mxu0 0.0
    %495 = vmatprep.subr.mxu0 0.0
    %496 = vmatpush1.msra.mxu0 0.0
    %497 = vmatprep.subr.mxu0 0.0
    %498 = vmatpush1.msra.mxu0 0.0
    %499 = vmatprep.subr.mxu0 0.0
    %500 = vmatpush1.msra.mxu0 0.0
    %501 = vmatprep.subr.mxu0 0.0
    %502 = vmatpush1.msra.mxu0 0.0
    %503 = vmatprep.subr.mxu0 0.0
    %504 = vmatpush1.msra.mxu0 0.0
    %505 = vmatprep.subr.mxu0 0.0
    %506 = vmatpush1.msra.mxu0 0.0
    %507 = vmatprep.subr.mxu0 0.0
    %508 = vmatpush1.msra.mxu0 0.0
    %509 = vmatprep.subr.mxu0 0.0
    %510 = vmatpush1.msra.mxu0 0.0
    %511 = vmatprep.subr.mxu0 0.0
    %512 = vmatpush1.msra.mxu0 0.0
    %513 = vmatprep.subr.mxu0 0.0
    %514 = vmatpush1.msra.mxu0 0.0
    %515 = vmatprep.subr.mxu0 0.0
    %516 = vmatpush1.msra.mxu0 0.0
    %517 = vmatprep.subr.mxu0 0.0
    %518 = vmatpush1.msra.mxu0 0.0
    %519 = vmatprep.subr.mxu0 0.0
    %520 = vmatpush1.msra.mxu0 0.0
    %521 = vmatprep.subr.mxu0 0.0
    %522 = vmatpush1.msra.mxu0 0.0
    %523 = vmatprep.subr.mxu0 0.0
    %524 = vmatpush1.msra.mxu0 0.0
    %525 = vmatprep.subr.mxu0 0.0
    %526 = vmatpush1.msra.mxu0 0.0
    %527 = vmatprep.subr.mxu0 0.0
    %528 = vmatpush1.msra.mxu0 0.0
    %529 = vmatprep.subr.mxu0 0.0
    %530 = vmatpush1.msra.mxu0 0.0
    %531 = vmatprep.subr.mxu0 0.0
    %532 = vmatpush1.msra.mxu0 0.0
    %533 = vmatprep.subr.mxu0 0.0
    %534 = vmatpush1.msra.mxu0 0.0
    %535 = vmatprep.subr.mxu0 0.0
    %536 = vmatpush1.msra.mxu0 0.0
    %537 = vmatprep.subr.mxu0 0.0
    %538 = vmatpush1.msra.mxu0 0.0
    %539 = vmatprep.subr.mxu0 0.0
    %540 = vmatpush1.msra.mxu0 0.0
    %541 = vmatprep.subr.mxu0 0.0
    %542 = vmatpush1.msra.mxu0 0.0
    %543 = vmatprep.subr.mxu0 0.0
    %544 = vmatpush1.msra.mxu0 0.0
    %545 = vmatprep.subr.mxu0 0.0
    %546 = vmatpush1.msra.mxu0 0.0
    %547 = vmatprep.mubr.f32.mxu0 0.0
    %548 = vmatmul.mubr.f32.gmra.mrb[0].mxu0 %v481
    %v549 = vpop.f32.mrb[0].mxu0
    %v550 = vadd.f32 %v146, %v549
    %v551 = vpop.f32.mrb[0].mxu0
    %552 = vdwg.mxu0
    %v553 = vld [vmem:[#allocation13 + $0xd] sm:$0x1]
    %v554 = vlaneseq
    %v555 = vshrl.u32 %v554, 7
    %v556 = vsub.s32 0, %v555
    %v557 = vrot.slane %v553, %v556
    %v559 = vsel %vm251, %v550, 0
    %561 = vmatprep.subr.mxu0 0.0
    %562 = vmatpush1.msra.mxu0 %v471
    %563 = vmatprep.subr.mxu0 0.0
    %564 = vmatpush1.msra.mxu0 %v472
    %565 = vmatprep.subr.mxu0 0.0
    %566 = vmatpush1.msra.mxu0 %v473
    %567 = vmatprep.subr.mxu0 0.0
    %568 = vmatpush1.msra.mxu0 %v474
    %569 = vmatprep.subr.mxu0 0.0
    %570 = vmatpush1.msra.mxu0 0.0
    %571 = vmatprep.subr.mxu0 0.0
    %572 = vmatpush1.msra.mxu0 0.0
    %573 = vmatprep.subr.mxu0 0.0
    %574 = vmatpush1.msra.mxu0 0.0
    %575 = vmatprep.subr.mxu0 0.0
    %576 = vmatpush1.msra.mxu0 0.0
    %577 = vmatprep.subr.mxu0 0.0
    %578 = vmatpush1.msra.mxu0 0.0
    %579 = vmatprep.subr.mxu0 0.0
    %580 = vmatpush1.msra.mxu0 0.0
    %581 = vmatprep.subr.mxu0 0.0
    %582 = vmatpush1.msra.mxu0 0.0
    %583 = vmatprep.subr.mxu0 0.0
    %584 = vmatpush1.msra.mxu0 0.0
    %585 = vmatprep.subr.mxu0 0.0
    %586 = vmatpush1.msra.mxu0 0.0
    %587 = vmatprep.subr.mxu0 0.0
    %588 = vmatpush1.msra.mxu0 0.0
    %589 = vmatprep.subr.mxu0 0.0
    %590 = vmatpush1.msra.mxu0 0.0
    %591 = vmatprep.subr.mxu0 0.0
    %592 = vmatpush1.msra.mxu0 0.0
    %593 = vmatprep.subr.mxu0 0.0
    %594 = vmatpush1.msra.mxu0 0.0
    %595 = vmatprep.subr.mxu0 0.0
    %596 = vmatpush1.msra.mxu0 0.0
    %597 = vmatprep.subr.mxu0 0.0
    %598 = vmatpush1.msra.mxu0 0.0
    %599 = vmatprep.subr.mxu0 0.0
    %600 = vmatpush1.msra.mxu0 0.0
    %601 = vmatprep.subr.mxu0 0.0
    %602 = vmatpush1.msra.mxu0 0.0
    %603 = vmatprep.subr.mxu0 0.0
    %604 = vmatpush1.msra.mxu0 0.0
    %605 = vmatprep.subr.mxu0 0.0
    %606 = vmatpush1.msra.mxu0 0.0
    %607 = vmatprep.subr.mxu0 0.0
    %608 = vmatpush1.msra.mxu0 0.0
    %609 = vmatprep.subr.mxu0 0.0
    %610 = vmatpush1.msra.mxu0 0.0
    %611 = vmatprep.subr.mxu0 0.0
    %612 = vmatpush1.msra.mxu0 0.0
    %613 = vmatprep.subr.mxu0 0.0
    %614 = vmatpush1.msra.mxu0 0.0
    %615 = vmatprep.subr.mxu0 0.0
    %616 = vmatpush1.msra.mxu0 0.0
    %617 = vmatprep.subr.mxu0 0.0
    %618 = vmatpush1.msra.mxu0 0.0
    %619 = vmatprep.subr.mxu0 0.0
    %620 = vmatpush1.msra.mxu0 0.0
    %621 = vmatprep.subr.mxu0 0.0
    %622 = vmatpush1.msra.mxu0 0.0
    %623 = vmatprep.subr.mxu0 0.0
    %624 = vmatpush1.msra.mxu0 0.0
    %625 = vmatprep.mubr.f32.mxu0 0.0
    %626 = vmatmul.mubr.f32.gmra.mrb[0].mxu0 %v559
    %v627 = vpop.f32.mrb[0].mxu0
    %v628 = vadd.f32 %v557, %v627
    %v629 = vpop.f32.mrb[0].mxu0
    %630 = vdwg.mxu0
    %v631 = vld [vmem:[#allocation13 + $0xe] sm:$0x1]
    %v632 = vld [vmem:[#allocation13 + $0xf] sm:$0x1]
    %vm633 = vcmask 254976
    %v634 = vsel %vm633, %v628, 0.0
    %v635 = vrot.slane %v634, 4
    %v636 = vadd.f32 %v634, %v635
    %v637 = vrot.slane %v636, 2
    %v638 = vadd.f32 %v636, %v637
    %v639 = vrot.slane %v638, 1
    %v640 = vadd.f32 %v638, %v639
    %v641 = vrcp.pop 2.0
    %v642 = vmul.f32 %v640, %v641
    %v643 = vsub.f32 %v628, %v642
    %v644 = vmul.f32 %v643, %v643
    %v645 = vsel %vm633, %v644, 0.0
    %v646 = vrot.slane %v645, 4
    %v647 = vadd.f32 %v645, %v646
    %v648 = vrot.slane %v647, 2
    %v649 = vadd.f32 %v647, %v648
    %v650 = vrot.slane %v649, 1
    %v651 = vadd.f32 %v649, %v650
    %v652 = vmul.f32 %v651, %v641
    %v653 = vadd.f32 %v652, 1e-05
    %v654 = vrsqrt.pop %v653
    %v655 = vmul.f32 %v643, %v654
    %v656 = vlaneseq
    %v657 = vshrl.u32 %v656, 7
    %v658 = vsub.s32 0, %v657
    %v659 = vrot.slane %v631, %v658
    %v660 = vmul.f32 %v655, %v659
    %v661 = vlaneseq
    %v662 = vshrl.u32 %v661, 7
    %v663 = vsub.s32 0, %v662
    %v664 = vrot.slane %v632, %v663
    %v665 = vadd.f32 %v660, %v664
    %v666 = vmax.f32 %v665, 0.0
    %v667 = vld [vmem:[#allocation13 + $0x10] sm:$0x1]
    %v668 = vlaneseq
    %v669 = vshrl.u32 %v668, 7
    %v670 = vsub.s32 0, %v669
    %v671 = vrot.slane %v667, %v670
    %v673 = vsel %vm251, %v666, 0
    %675 = vmatprep.subr.mxu0 0.0
    %676 = vmatpush1.msra.mxu0 %v476
    %677 = vmatprep.subr.mxu0 0.0
    %678 = vmatpush1.msra.mxu0 %v477
    %679 = vmatprep.subr.mxu0 0.0
    %680 = vmatpush1.msra.mxu0 %v478
    %681 = vmatprep.subr.mxu0 0.0
    %682 = vmatpush1.msra.mxu0 %v479
    %683 = vmatprep.subr.mxu0 0.0
    %684 = vmatpush1.msra.mxu0 0.0
    %685 = vmatprep.subr.mxu0 0.0
    %686 = vmatpush1.msra.mxu0 0.0
    %687 = vmatprep.subr.mxu0 0.0
    %688 = vmatpush1.msra.mxu0 0.0
    %689 = vmatprep.subr.mxu0 0.0
    %690 = vmatpush1.msra.mxu0 0.0
    %691 = vmatprep.subr.mxu0 0.0
    %692 = vmatpush1.msra.mxu0 0.0
    %693 = vmatprep.subr.mxu0 0.0
    %694 = vmatpush1.msra.mxu0 0.0
    %695 = vmatprep.subr.mxu0 0.0
    %696 = vmatpush1.msra.mxu0 0.0
    %697 = vmatprep.subr.mxu0 0.0
    %698 = vmatpush1.msra.mxu0 0.0
    %699 = vmatprep.subr.mxu0 0.0
    %700 = vmatpush1.msra.mxu0 0.0
    %701 = vmatprep.subr.mxu0 0.0
    %702 = vmatpush1.msra.mxu0 0.0
    %703 = vmatprep.subr.mxu0 0.0
    %704 = vmatpush1.msra.mxu0 0.0
    %705 = vmatprep.subr.mxu0 0.0
    %706 = vmatpush1.msra.mxu0 0.0
    %707 = vmatprep.subr.mxu0 0.0
    %708 = vmatpush1.msra.mxu0 0.0
    %709 = vmatprep.subr.mxu0 0.0
    %710 = vmatpush1.msra.mxu0 0.0
    %711 = vmatprep.subr.mxu0 0.0
    %712 = vmatpush1.msra.mxu0 0.0
    %713 = vmatprep.subr.mxu0 0.0
    %714 = vmatpush1.msra.mxu0 0.0
    %715 = vmatprep.subr.mxu0 0.0
    %716 = vmatpush1.msra.mxu0 0.0
    %717 = vmatprep.subr.mxu0 0.0
    %718 = vmatpush1.msra.mxu0 0.0
    %719 = vmatprep.subr.mxu0 0.0
    %720 = vmatpush1.msra.mxu0 0.0
    %721 = vmatprep.subr.mxu0 0.0
    %722 = vmatpush1.msra.mxu0 0.0
    %723 = vmatprep.subr.mxu0 0.0
    %724 = vmatpush1.msra.mxu0 0.0
    %725 = vmatprep.subr.mxu0 0.0
    %726 = vmatpush1.msra.mxu0 0.0
    %727 = vmatprep.subr.mxu0 0.0
    %728 = vmatpush1.msra.mxu0 0.0
    %729 = vmatprep.subr.mxu0 0.0
    %730 = vmatpush1.msra.mxu0 0.0
    %731 = vmatprep.subr.mxu0 0.0
    %732 = vmatpush1.msra.mxu0 0.0
    %733 = vmatprep.subr.mxu0 0.0
    %734 = vmatpush1.msra.mxu0 0.0
    %735 = vmatprep.subr.mxu0 0.0
    %736 = vmatpush1.msra.mxu0 0.0
    %737 = vmatprep.subr.mxu0 0.0
    %738 = vmatpush1.msra.mxu0 0.0
    %739 = vmatprep.mubr.f32.mxu0 0.0
    %740 = vmatmul.mubr.f32.gmra.mrb[0].mxu0 %v673
    %v741 = vpop.f32.mrb[0].mxu0
    %v742 = vadd.f32 %v671, %v741
    %v743 = vpop.f32.mrb[0].mxu0
    %744 = vdwg.mxu0
    %v745 = vld [vmem:[#allocation13 + $0x11] sm:$0x1]
    %v746 = vld [vmem:[#allocation13 + $0x12] sm:$0x1]
    %v747 = vsel %vm633, %v742, 0.0
    %v748 = vrot.slane %v747, 4
    %v749 = vadd.f32 %v747, %v748
    %v750 = vrot.slane %v749, 2
    %v751 = vadd.f32 %v749, %v750
    %v752 = vrot.slane %v751, 1
    %v753 = vadd.f32 %v751, %v752
    %v754 = vmul.f32 %v753, %v641
    %v755 = vsub.f32 %v742, %v754
    %v756 = vmul.f32 %v755, %v755
    %v757 = vsel %vm633, %v756, 0.0
    %v758 = vrot.slane %v757, 4
    %v759 = vadd.f32 %v757, %v758
    %v760 = vrot.slane %v759, 2
    %v761 = vadd.f32 %v759, %v760
    %v762 = vrot.slane %v761, 1
    %v763 = vadd.f32 %v761, %v762
    %v764 = vmul.f32 %v763, %v641
    %v765 = vadd.f32 %v764, 1e-05
    %v766 = vrsqrt.pop %v765
    %v767 = vmul.f32 %v755, %v766
    %v768 = vlaneseq
    %v769 = vshrl.u32 %v768, 7
    %v770 = vsub.s32 0, %v769
    %v771 = vrot.slane %v745, %v770
    %v772 = vmul.f32 %v767, %v771
    %v773 = vlaneseq
    %v774 = vshrl.u32 %v773, 7
    %v775 = vsub.s32 0, %v774
    %v776 = vrot.slane %v746, %v775
    %v777 = vadd.f32 %v772, %v776
    %v778 = vmax.f32 %v777, 0.0
    %v779 = vadd.f32 %v146, %v778
    %v781 = vsel %vm157, %v779, 0
    %783 = vmatprep.subr.mxu0 0.0
    %784 = vmatpush1.msra.mxu0 %v781
    %785 = vmatprep.subr.mxu0 0.0
    %786 = vmatpush1.msra.mxu0 0.0
    %787 = vmatprep.subr.mxu0 0.0
    %788 = vmatpush1.msra.mxu0 0.0
    %789 = vmatprep.subr.mxu0 0.0
    %790 = vmatpush1.msra.mxu0 0.0
    %791 = vmatprep.subr.mxu0 0.0
    %792 = vmatpush1.msra.mxu0 0.0
    %793 = vmatprep.subr.mxu0 0.0
    %794 = vmatpush1.msra.mxu0 0.0
    %795 = vmatprep.subr.mxu0 0.0
    %796 = vmatpush1.msra.mxu0 0.0
    %797 = vmatprep.subr.mxu0 0.0
    %798 = vmatpush1.msra.mxu0 0.0
    %799 = vmatprep.subr.mxu0 0.0
    %800 = vmatpush1.msra.mxu0 0.0
    %801 = vmatprep.subr.mxu0 0.0
    %802 = vmatpush1.msra.mxu0 0.0
    %803 = vmatprep.subr.mxu0 0.0
    %804 = vmatpush1.msra.mxu0 0.0
    %805 = vmatprep.subr.mxu0 0.0
    %806 = vmatpush1.msra.mxu0 0.0
    %807 = vmatprep.subr.mxu0 0.0
    %808 = vmatpush1.msra.mxu0 0.0
    %809 = vmatprep.subr.mxu0 0.0
    %810 = vmatpush1.msra.mxu0 0.0
    %811 = vmatprep.subr.mxu0 0.0
    %812 = vmatpush1.msra.mxu0 0.0
    %813 = vmatprep.subr.mxu0 0.0
    %814 = vmatpush1.msra.mxu0 0.0
    %815 = vmatprep.subr.mxu0 0.0
    %816 = vmatpush1.msra.mxu0 0.0
    %817 = vmatprep.subr.mxu0 0.0
    %818 = vmatpush1.msra.mxu0 0.0
    %819 = vmatprep.subr.mxu0 0.0
    %820 = vmatpush1.msra.mxu0 0.0
    %821 = vmatprep.subr.mxu0 0.0
    %822 = vmatpush1.msra.mxu0 0.0
    %823 = vmatprep.subr.mxu0 0.0
    %824 = vmatpush1.msra.mxu0 0.0
    %825 = vmatprep.subr.mxu0 0.0
    %826 = vmatpush1.msra.mxu0 0.0
    %827 = vmatprep.subr.mxu0 0.0
    %828 = vmatpush1.msra.mxu0 0.0
    %829 = vmatprep.subr.mxu0 0.0
    %830 = vmatpush1.msra.mxu0 0.0
    %831 = vmatprep.subr.mxu0 0.0
    %832 = vmatpush1.msra.mxu0 0.0
    %833 = vmatprep.subr.mxu0 0.0
    %834 = vmatpush1.msra.mxu0 0.0
    %835 = vmatprep.subr.mxu0 0.0
    %836 = vmatpush1.msra.mxu0 0.0
    %837 = vmatprep.subr.mxu0 0.0
    %838 = vmatpush1.msra.mxu0 0.0
    %839 = vmatprep.subr.mxu0 0.0
    %840 = vmatpush1.msra.mxu0 0.0
    %841 = vmatprep.subr.mxu0 0.0
    %842 = vmatpush1.msra.mxu0 0.0
    %843 = vmatprep.subr.mxu0 0.0
    %844 = vmatpush1.msra.mxu0 0.0
    %845 = vmatprep.subr.mxu0 0.0
    %846 = vmatpush1.msra.mxu0 0.0
    %847 = vmatprep.mubr.f32.mxu0 0.0
    %848 = vmatmul.mubr.f32.gmra.mrb[0].mxu0 %v149
    %v849 = vpop.f32.mrb[0].mxu0
    %v850 = vadd.f32 0.0, %v849
    %v851 = vpop.f32.mrb[0].mxu0
    %852 = vmatprep.mubr.f32.mxu0 0.0
    %853 = vmatmul.mubr.f32.gmra.mrb[0].mxu0 %v152
    %v854 = vpop.f32.mrb[0].mxu0
    %v855 = vadd.f32 0.0, %v854
    %v856 = vpop.f32.mrb[0].mxu0
    %857 = vmatprep.mubr.f32.mxu0 0.0
    %858 = vmatmul.mubr.f32.gmra.mrb[0].mxu0 %v155
    %v859 = vpop.f32.mrb[0].mxu0
    %v860 = vadd.f32 0.0, %v859
    %v861 = vpop.f32.mrb[0].mxu0
    %862 = vdwg.mxu0
    %v863 = vadd.f32 %v467, %v850
    %v864 = vadd.f32 %v468, %v855
    %v865 = vadd.f32 %v469, %v860
    %v866 = vld [vmem:[#allocation13 + $0x4] sm:$0x1]
    %v867 = vld [vmem:[#allocation13 + $0x5] sm:$0x1]
    %v868 = vld [vmem:[#allocation13 + $0x6] sm:$0x1]
    %s869 = scalar_lea.vmem [#allocation11], 32
    %v870 = vld [vmem:[%s869] sm:$0xff]
    %v871 = vld [vmem:[%s869 + $0x8] sm:$0xff]
    %v872 = vld [vmem:[%s869 + $0x10] sm:$0xff]
    %v873 = vld [vmem:[%s869 + $0x18] sm:$0xff]
    %v875 = vsel %vm251, %v863, 0
    %v878 = vsel %vm251, %v864, 0
    %v881 = vsel %vm251, %v865, 0
    %883 = vmatprep.subr.mxu0 0.0
    %884 = vmatpush1.msra.mxu0 %v870
    %885 = vmatprep.subr.mxu0 0.0
    %886 = vmatpush1.msra.mxu0 %v871
    %887 = vmatprep.subr.mxu0 0.0
    %888 = vmatpush1.msra.mxu0 %v872
    %889 = vmatprep.subr.mxu0 0.0
    %890 = vmatpush1.msra.mxu0 %v873
    %891 = vmatprep.subr.mxu0 0.0
    %892 = vmatpush1.msra.mxu0 0.0
    %893 = vmatprep.subr.mxu0 0.0
    %894 = vmatpush1.msra.mxu0 0.0
    %895 = vmatprep.subr.mxu0 0.0
    %896 = vmatpush1.msra.mxu0 0.0
    %897 = vmatprep.subr.mxu0 0.0
    %898 = vmatpush1.msra.mxu0 0.0
    %899 = vmatprep.subr.mxu0 0.0
    %900 = vmatpush1.msra.mxu0 0.0
    %901 = vmatprep.subr.mxu0 0.0
    %902 = vmatpush1.msra.mxu0 0.0
    %903 = vmatprep.subr.mxu0 0.0
    %904 = vmatpush1.msra.mxu0 0.0
    %905 = vmatprep.subr.mxu0 0.0
    %906 = vmatpush1.msra.mxu0 0.0
    %907 = vmatprep.subr.mxu0 0.0
    %908 = vmatpush1.msra.mxu0 0.0
    %909 = vmatprep.subr.mxu0 0.0
    %910 = vmatpush1.msra.mxu0 0.0
    %911 = vmatprep.subr.mxu0 0.0
    %912 = vmatpush1.msra.mxu0 0.0
    %913 = vmatprep.subr.mxu0 0.0
    %914 = vmatpush1.msra.mxu0 0.0
    %915 = vmatprep.subr.mxu0 0.0
    %916 = vmatpush1.msra.mxu0 0.0
    %917 = vmatprep.subr.mxu0 0.0
    %918 = vmatpush1.msra.mxu0 0.0
    %919 = vmatprep.subr.mxu0 0.0
    %920 = vmatpush1.msra.mxu0 0.0
    %921 = vmatprep.subr.mxu0 0.0
    %922 = vmatpush1.msra.mxu0 0.0
    %923 = vmatprep.subr.mxu0 0.0
    %924 = vmatpush1.msra.mxu0 0.0
    %925 = vmatprep.subr.mxu0 0.0
    %926 = vmatpush1.msra.mxu0 0.0
    %927 = vmatprep.subr.mxu0 0.0
    %928 = vmatpush1.msra.mxu0 0.0
    %929 = vmatprep.subr.mxu0 0.0
    %930 = vmatpush1.msra.mxu0 0.0
    %931 = vmatprep.subr.mxu0 0.0
    %932 = vmatpush1.msra.mxu0 0.0
    %933 = vmatprep.subr.mxu0 0.0
    %934 = vmatpush1.msra.mxu0 0.0
    %935 = vmatprep.subr.mxu0 0.0
    %936 = vmatpush1.msra.mxu0 0.0
    %937 = vmatprep.subr.mxu0 0.0
    %938 = vmatpush1.msra.mxu0 0.0
    %939 = vmatprep.subr.mxu0 0.0
    %940 = vmatpush1.msra.mxu0 0.0
    %941 = vmatprep.subr.mxu0 0.0
    %942 = vmatpush1.msra.mxu0 0.0
    %943 = vmatprep.subr.mxu0 0.0
    %944 = vmatpush1.msra.mxu0 0.0
    %945 = vmatprep.subr.mxu0 0.0
    %946 = vmatpush1.msra.mxu0 0.0
    %947 = vmatprep.mubr.f32.mxu0 0.0
    %948 = vmatmul.mubr.f32.gmra.mrb[0].mxu0 %v875
    %v949 = vpop.f32.mrb[0].mxu0
    %v950 = vadd.f32 0.0, %v949
    %v951 = vpop.f32.mrb[0].mxu0
    %952 = vmatprep.mubr.f32.mxu0 0.0
    %953 = vmatmul.mubr.f32.gmra.mrb[0].mxu0 %v878
    %v954 = vpop.f32.mrb[0].mxu0
    %v955 = vadd.f32 0.0, %v954
    %v956 = vpop.f32.mrb[0].mxu0
    %957 = vmatprep.mubr.f32.mxu0 0.0
    %958 = vmatmul.mubr.f32.gmra.mrb[0].mxu0 %v881
    %v959 = vpop.f32.mrb[0].mxu0
    %v960 = vadd.f32 0.0, %v959
    %v961 = vpop.f32.mrb[0].mxu0
    %962 = vdwg.mxu0
    %v963 = vpack.c.bf16 %v955, %v950
    %v964 = vpack.c.bf16 %v960, %v960
    %v965 = vlaneseq
    %v966 = vshrl.u32 %v965, 7
    %v967 = vsub.s32 0, %v966
    %v968 = vrot.slane %v866, %v967
    %v970 = vsel %vm362, %v964, 0
    %972 = vmatprep.subr.bf16.mxu0 0
    %973 = vmatpush1.bf16.msra.mxu0 %v963
    %974 = vmatprep.subr.bf16.mxu0 0
    %975 = vmatpush1.bf16.msra.mxu0 %v970
    %976 = vmatprep.subr.bf16.mxu0 0
    %977 = vmatpush1.bf16.msra.mxu0 0
    %978 = vmatprep.subr.bf16.mxu0 0
    %979 = vmatpush1.bf16.msra.mxu0 0
    %980 = vmatprep.subr.bf16.mxu0 0
    %981 = vmatpush1.bf16.msra.mxu0 0
    %982 = vmatprep.subr.bf16.mxu0 0
    %983 = vmatpush1.bf16.msra.mxu0 0
    %984 = vmatprep.subr.bf16.mxu0 0
    %985 = vmatpush1.bf16.msra.mxu0 0
    %986 = vmatprep.subr.bf16.mxu0 0
    %987 = vmatpush1.bf16.msra.mxu0 0
    %988 = vmatprep.subr.bf16.mxu0 0
    %989 = vmatpush1.bf16.msra.mxu0 0
    %990 = vmatprep.subr.bf16.mxu0 0
    %991 = vmatpush1.bf16.msra.mxu0 0
    %992 = vmatprep.subr.bf16.mxu0 0
    %993 = vmatpush1.bf16.msra.mxu0 0
    %994 = vmatprep.subr.bf16.mxu0 0
    %995 = vmatpush1.bf16.msra.mxu0 0
    %996 = vmatprep.subr.bf16.mxu0 0
    %997 = vmatpush1.bf16.msra.mxu0 0
    %998 = vmatprep.subr.bf16.mxu0 0
    %999 = vmatpush1.bf16.msra.mxu0 0
    %1000 = vmatprep.subr.bf16.mxu0 0
    %1001 = vmatpush1.bf16.msra.mxu0 0
    %1002 = vmatprep.subr.bf16.mxu0 0
    %1003 = vmatpush1.bf16.msra.mxu0 0
    %1004 = vmatprep.mubr.bf16.mxu0 0
    %1005 = vmatmul.mubr.bf16.gmra.mrb[0].mxu0 %v357
    %v1006 = vpop.f32.mrb[0].mxu0
    %v1007 = vadd.f32 %v968, %v1006
    %v1008 = vpop.f32.mrb[0].mxu0
    %v1009 = vpop.f32.mrb[0].mxu0
    %v1010 = vadd.f32 %v968, %v1009
    %v1011 = vpop.f32.mrb[0].mxu0
    %1012 = vmatprep.mubr.bf16.mxu0 0
    %1013 = vmatmul.mubr.bf16.gmra.mrb[0].mxu0 %v360
    %v1014 = vpop.f32.mrb[0].mxu0
    %v1015 = vadd.f32 %v968, %v1014
    %v1016 = vpop.f32.mrb[0].mxu0
    %v1017 = vpop.f32.mrb[0].mxu0
    %v1018 = vpop.f32.mrb[0].mxu0
    %1019 = vdwg.mxu0
    %v1020 = vsel %vm251, %v1007, 0.0
    %v1021 = vsel %vm251, %v1010, 0.0
    %v1022 = vadd.f32 %v1020, %v1021
    %v1023 = vsel %vm251, %v1015, 0.0
    %v1024 = vadd.f32 %v1022, %v1023
    %v1025 = vrot.slane %v1024, 4
    %v1026 = vadd.f32 %v1024, %v1025
    %v1027 = vrot.slane %v1026, 2
    %v1028 = vadd.f32 %v1026, %v1027
    %v1029 = vrot.slane %v1028, 1
    %v1030 = vadd.f32 %v1028, %v1029
    %v1031 = vmul.f32 %v1030, %v425
    %v1032 = vsub.f32 %v1007, %v1031
    %v1033 = vsub.f32 %v1010, %v1031
    %v1034 = vsub.f32 %v1015, %v1031
    %v1035 = vmul.f32 %v1032, %v1032
    %v1036 = vmul.f32 %v1033, %v1033
    %v1037 = vmul.f32 %v1034, %v1034
    %v1038 = vsel %vm251, %v1035, 0.0
    %v1039 = vsel %vm251, %v1036, 0.0
    %v1040 = vadd.f32 %v1038, %v1039
    %v1041 = vsel %vm251, %v1037, 0.0
    %v1042 = vadd.f32 %v1040, %v1041
    %v1043 = vrot.slane %v1042, 4
    %v1044 = vadd.f32 %v1042, %v1043
    %v1045 = vrot.slane %v1044, 2
    %v1046 = vadd.f32 %v1044, %v1045
    %v1047 = vrot.slane %v1046, 1
    %v1048 = vadd.f32 %v1046, %v1047
    %v1049 = vmul.f32 %v1048, %v425
    %v1050 = vadd.f32 %v1049, 1e-05
    %v1051 = vrsqrt.pop %v1050
    %v1052 = vmul.f32 %v1032, %v1051
    %v1053 = vmul.f32 %v1033, %v1051
    %v1054 = vmul.f32 %v1034, %v1051
    %v1055 = vlaneseq
    %v1056 = vshrl.u32 %v1055, 7
    %v1057 = vsub.s32 0, %v1056
    %v1058 = vrot.slane %v867, %v1057
    %v1059 = vmul.f32 %v1052, %v1058
    %v1060 = vmul.f32 %v1053, %v1058
    %v1061 = vmul.f32 %v1054, %v1058
    %v1062 = vlaneseq
    %v1063 = vshrl.u32 %v1062, 7
    %v1064 = vsub.s32 0, %v1063
    %v1065 = vrot.slane %v868, %v1064
    %v1066 = vadd.f32 %v1059, %v1065
    %v1067 = vadd.f32 %v1060, %v1065
    %v1068 = vadd.f32 %v1061, %v1065
    %v1069 = vmax.f32 %v1066, 0.0
    %v1070 = vmax.f32 %v1067, 0.0
    %v1071 = vmax.f32 %v1068, 0.0
    %v1072 = vadd.f32 %v1069, %v863
    %v1073 = vadd.f32 %v1070, %v864
    %v1074 = vadd.f32 %v1071, %v865
    %s1075 = scalar_lea.vmem [#allocation11], 192
    %v1076 = vld [vmem:[%s1075] sm:$0xff]
    %v1077 = vld [vmem:[%s1075 + $0x8] sm:$0xff]
    %v1078 = vld [vmem:[%s1075 + $0x10] sm:$0xff]
    %v1079 = vld [vmem:[%s1075 + $0x18] sm:$0xff]
    %s1080 = scalar_lea.vmem [#allocation11], 224
    %v1081 = vld [vmem:[%s1080] sm:$0xff]
    %v1082 = vld [vmem:[%s1080 + $0x8] sm:$0xff]
    %v1083 = vld [vmem:[%s1080 + $0x10] sm:$0xff]
    %v1084 = vld [vmem:[%s1080 + $0x18] sm:$0xff]
    %1085 = vmatprep.subr.mxu0 0.0
    %1086 = vmatpush1.msra.mxu0 %v1072
    %1087 = vmatprep.subr.mxu0 0.0
    %1088 = vmatpush1.msra.mxu0 %v1073
    %1089 = vmatprep.subr.mxu0 0.0
    %1090 = vmatpush1.msra.mxu0 %v1074
    %1091 = vmatprep.subr.mxu0 0.0
    %1092 = vmatpush1.msra.mxu0 0.0
    %1093 = vmatprep.subr.mxu0 0.0
    %1094 = vmatpush1.msra.mxu0 0.0
    %1095 = vmatprep.subr.mxu0 0.0
    %1096 = vmatpush1.msra.mxu0 0.0
    %1097 = vmatprep.subr.mxu0 0.0
    %1098 = vmatpush1.msra.mxu0 0.0
    %1099 = vmatprep.subr.mxu0 0.0
    %1100 = vmatpush1.msra.mxu0 0.0
    %1101 = vmatprep.subr.mxu0 0.0
    %1102 = vmatpush1.msra.mxu0 0.0
    %1103 = vmatprep.subr.mxu0 0.0
    %1104 = vmatpush1.msra.mxu0 0.0
    %1105 = vmatprep.subr.mxu0 0.0
    %1106 = vmatpush1.msra.mxu0 0.0
    %1107 = vmatprep.subr.mxu0 0.0
    %1108 = vmatpush1.msra.mxu0 0.0
    %1109 = vmatprep.subr.mxu0 0.0
    %1110 = vmatpush1.msra.mxu0 0.0
    %1111 = vmatprep.subr.mxu0 0.0
    %1112 = vmatpush1.msra.mxu0 0.0
    %1113 = vmatprep.subr.mxu0 0.0
    %1114 = vmatpush1.msra.mxu0 0.0
    %1115 = vmatprep.subr.mxu0 0.0
    %1116 = vmatpush1.msra.mxu0 0.0
    %1117 = vmatprep.subr.mxu0 0.0
    %1118 = vmatpush1.msra.mxu0 0.0
    %1119 = vmatprep.subr.mxu0 0.0
    %1120 = vmatpush1.msra.mxu0 0.0
    %1121 = vmatprep.subr.mxu0 0.0
    %1122 = vmatpush1.msra.mxu0 0.0
    %1123 = vmatprep.subr.mxu0 0.0
    %1124 = vmatpush1.msra.mxu0 0.0
    %1125 = vmatprep.subr.mxu0 0.0
    %1126 = vmatpush1.msra.mxu0 0.0
    %1127 = vmatprep.subr.mxu0 0.0
    %1128 = vmatpush1.msra.mxu0 0.0
    %1129 = vmatprep.subr.mxu0 0.0
    %1130 = vmatpush1.msra.mxu0 0.0
    %1131 = vmatprep.subr.mxu0 0.0
    %1132 = vmatpush1.msra.mxu0 0.0
    %1133 = vmatprep.subr.mxu0 0.0
    %1134 = vmatpush1.msra.mxu0 0.0
    %1135 = vmatprep.subr.mxu0 0.0
    %1136 = vmatpush1.msra.mxu0 0.0
    %1137 = vmatprep.subr.mxu0 0.0
    %1138 = vmatpush1.msra.mxu0 0.0
    %1139 = vmatprep.subr.mxu0 0.0
    %1140 = vmatpush1.msra.mxu0 0.0
    %1141 = vmatprep.subr.mxu0 0.0
    %1142 = vmatpush1.msra.mxu0 0.0
    %1143 = vmatprep.subr.mxu0 0.0
    %1144 = vmatpush1.msra.mxu0 0.0
    %1145 = vmatprep.subr.mxu0 0.0
    %1146 = vmatpush1.msra.mxu0 0.0
    %1147 = vmatprep.subr.mxu0 0.0
    %1148 = vmatpush1.msra.mxu0 0.0
    %1149 = vmatprep.mubr.f32.mxu0 0.0
    %1150 = vmatmul.mubr.f32.gmra.mrb[0].mxu0 %v481
    %v1151 = vpop.f32.mrb[0].mxu0
    %v1152 = vadd.f32 %v779, %v1151
    %v1153 = vpop.f32.mrb[0].mxu0
    %1154 = vdwg.mxu0
    %v1155 = vld [vmem:[#allocation13 + $0x13] sm:$0x1]
    %v1156 = vlaneseq
    %v1157 = vshrl.u32 %v1156, 7
    %v1158 = vsub.s32 0, %v1157
    %v1159 = vrot.slane %v1155, %v1158
    %v1161 = vsel %vm251, %v1152, 0
    %1163 = vmatprep.subr.mxu0 0.0
    %1164 = vmatpush1.msra.mxu0 %v1076
    %1165 = vmatprep.subr.mxu0 0.0
    %1166 = vmatpush1.msra.mxu0 %v1077
    %1167 = vmatprep.subr.mxu0 0.0
    %1168 = vmatpush1.msra.mxu0 %v1078
    %1169 = vmatprep.subr.mxu0 0.0
    %1170 = vmatpush1.msra.mxu0 %v1079
    %1171 = vmatprep.subr.mxu0 0.0
    %1172 = vmatpush1.msra.mxu0 0.0
    %1173 = vmatprep.subr.mxu0 0.0
    %1174 = vmatpush1.msra.mxu0 0.0
    %1175 = vmatprep.subr.mxu0 0.0
    %1176 = vmatpush1.msra.mxu0 0.0
    %1177 = vmatprep.subr.mxu0 0.0
    %1178 = vmatpush1.msra.mxu0 0.0
    %1179 = vmatprep.subr.mxu0 0.0
    %1180 = vmatpush1.msra.mxu0 0.0
    %1181 = vmatprep.subr.mxu0 0.0
    %1182 = vmatpush1.msra.mxu0 0.0
    %1183 = vmatprep.subr.mxu0 0.0
    %1184 = vmatpush1.msra.mxu0 0.0
    %1185 = vmatprep.subr.mxu0 0.0
    %1186 = vmatpush1.msra.mxu0 0.0
    %1187 = vmatprep.subr.mxu0 0.0
    %1188 = vmatpush1.msra.mxu0 0.0
    %1189 = vmatprep.subr.mxu0 0.0
    %1190 = vmatpush1.msra.mxu0 0.0
    %1191 = vmatprep.subr.mxu0 0.0
    %1192 = vmatpush1.msra.mxu0 0.0
    %1193 = vmatprep.subr.mxu0 0.0
    %1194 = vmatpush1.msra.mxu0 0.0
    %1195 = vmatprep.subr.mxu0 0.0
    %1196 = vmatpush1.msra.mxu0 0.0
    %1197 = vmatprep.subr.mxu0 0.0
    %1198 = vmatpush1.msra.mxu0 0.0
    %1199 = vmatprep.subr.mxu0 0.0
    %1200 = vmatpush1.msra.mxu0 0.0
    %1201 = vmatprep.subr.mxu0 0.0
    %1202 = vmatpush1.msra.mxu0 0.0
    %1203 = vmatprep.subr.mxu0 0.0
    %1204 = vmatpush1.msra.mxu0 0.0
    %1205 = vmatprep.subr.mxu0 0.0
    %1206 = vmatpush1.msra.mxu0 0.0
    %1207 = vmatprep.subr.mxu0 0.0
    %1208 = vmatpush1.msra.mxu0 0.0
    %1209 = vmatprep.subr.mxu0 0.0
    %1210 = vmatpush1.msra.mxu0 0.0
    %1211 = vmatprep.subr.mxu0 0.0
    %1212 = vmatpush1.msra.mxu0 0.0
    %1213 = vmatprep.subr.mxu0 0.0
    %1214 = vmatpush1.msra.mxu0 0.0
    %1215 = vmatprep.subr.mxu0 0.0
    %1216 = vmatpush1.msra.mxu0 0.0
    %1217 = vmatprep.subr.mxu0 0.0
    %1218 = vmatpush1.msra.mxu0 0.0
    %1219 = vmatprep.subr.mxu0 0.0
    %1220 = vmatpush1.msra.mxu0 0.0
    %1221 = vmatprep.subr.mxu0 0.0
    %1222 = vmatpush1.msra.mxu0 0.0
    %1223 = vmatprep.subr.mxu0 0.0
    %1224 = vmatpush1.msra.mxu0 0.0
    %1225 = vmatprep.subr.mxu0 0.0
    %1226 = vmatpush1.msra.mxu0 0.0
    %1227 = vmatprep.mubr.f32.mxu0 0.0
    %1228 = vmatmul.mubr.f32.gmra.mrb[0].mxu0 %v1161
    %v1229 = vpop.f32.mrb[0].mxu0
    %v1230 = vadd.f32 %v1159, %v1229
    %v1231 = vpop.f32.mrb[0].mxu0
    %1232 = vdwg.mxu0
    %v1233 = vld [vmem:[#allocation13 + $0x14] sm:$0x1]
    %v1234 = vld [vmem:[#allocation13 + $0x15] sm:$0x1]
    %v1235 = vsel %vm633, %v1230, 0.0
    %v1236 = vrot.slane %v1235, 4
    %v1237 = vadd.f32 %v1235, %v1236
    %v1238 = vrot.slane %v1237, 2
    %v1239 = vadd.f32 %v1237, %v1238
    %v1240 = vrot.slane %v1239, 1
    %v1241 = vadd.f32 %v1239, %v1240
    %v1242 = vmul.f32 %v1241, %v641
    %v1243 = vsub.f32 %v1230, %v1242
    %v1244 = vmul.f32 %v1243, %v1243
    %v1245 = vsel %vm633, %v1244, 0.0
    %v1246 = vrot.slane %v1245, 4
    %v1247 = vadd.f32 %v1245, %v1246
    %v1248 = vrot.slane %v1247, 2
    %v1249 = vadd.f32 %v1247, %v1248
    %v1250 = vrot.slane %v1249, 1
    %v1251 = vadd.f32 %v1249, %v1250
    %v1252 = vmul.f32 %v1251, %v641
    %v1253 = vadd.f32 %v1252, 1e-05
    %v1254 = vrsqrt.pop %v1253
    %v1255 = vmul.f32 %v1243, %v1254
    %v1256 = vlaneseq
    %v1257 = vshrl.u32 %v1256, 7
    %v1258 = vsub.s32 0, %v1257
    %v1259 = vrot.slane %v1233, %v1258
    %v1260 = vmul.f32 %v1255, %v1259
    %v1261 = vlaneseq
    %v1262 = vshrl.u32 %v1261, 7
    %v1263 = vsub.s32 0, %v1262
    %v1264 = vrot.slane %v1234, %v1263
    %v1265 = vadd.f32 %v1260, %v1264
    %v1266 = vmax.f32 %v1265, 0.0
    %v1267 = vld [vmem:[#allocation13 + $0x16] sm:$0x1]
    %v1268 = vlaneseq
    %v1269 = vshrl.u32 %v1268, 7
    %v1270 = vsub.s32 0, %v1269
    %v1271 = vrot.slane %v1267, %v1270
    %v1273 = vsel %vm251, %v1266, 0
    %1275 = vmatprep.subr.mxu0 0.0
    %1276 = vmatpush1.msra.mxu0 %v1081
    %1277 = vmatprep.subr.mxu0 0.0
    %1278 = vmatpush1.msra.mxu0 %v1082
    %1279 = vmatprep.subr.mxu0 0.0
    %1280 = vmatpush1.msra.mxu0 %v1083
    %1281 = vmatprep.subr.mxu0 0.0
    %1282 = vmatpush1.msra.mxu0 %v1084
    %1283 = vmatprep.subr.mxu0 0.0
    %1284 = vmatpush1.msra.mxu0 0.0
    %1285 = vmatprep.subr.mxu0 0.0
    %1286 = vmatpush1.msra.mxu0 0.0
    %1287 = vmatprep.subr.mxu0 0.0
    %1288 = vmatpush1.msra.mxu0 0.0
    %1289 = vmatprep.subr.mxu0 0.0
    %1290 = vmatpush1.msra.mxu0 0.0
    %1291 = vmatprep.subr.mxu0 0.0
    %1292 = vmatpush1.msra.mxu0 0.0
    %1293 = vmatprep.subr.mxu0 0.0
    %1294 = vmatpush1.msra.mxu0 0.0
    %1295 = vmatprep.subr.mxu0 0.0
    %1296 = vmatpush1.msra.mxu0 0.0
    %1297 = vmatprep.subr.mxu0 0.0
    %1298 = vmatpush1.msra.mxu0 0.0
    %1299 = vmatprep.subr.mxu0 0.0
    %1300 = vmatpush1.msra.mxu0 0.0
    %1301 = vmatprep.subr.mxu0 0.0
    %1302 = vmatpush1.msra.mxu0 0.0
    %1303 = vmatprep.subr.mxu0 0.0
    %1304 = vmatpush1.msra.mxu0 0.0
    %1305 = vmatprep.subr.mxu0 0.0
    %1306 = vmatpush1.msra.mxu0 0.0
    %1307 = vmatprep.subr.mxu0 0.0
    %1308 = vmatpush1.msra.mxu0 0.0
    %1309 = vmatprep.subr.mxu0 0.0
    %1310 = vmatpush1.msra.mxu0 0.0
    %1311 = vmatprep.subr.mxu0 0.0
    %1312 = vmatpush1.msra.mxu0 0.0
    %1313 = vmatprep.subr.mxu0 0.0
    %1314 = vmatpush1.msra.mxu0 0.0
    %1315 = vmatprep.subr.mxu0 0.0
    %1316 = vmatpush1.msra.mxu0 0.0
    %1317 = vmatprep.subr.mxu0 0.0
    %1318 = vmatpush1.msra.mxu0 0.0
    %1319 = vmatprep.subr.mxu0 0.0
    %1320 = vmatpush1.msra.mxu0 0.0
    %1321 = vmatprep.subr.mxu0 0.0
    %1322 = vmatpush1.msra.mxu0 0.0
    %1323 = vmatprep.subr.mxu0 0.0
    %1324 = vmatpush1.msra.mxu0 0.0
    %1325 = vmatprep.subr.mxu0 0.0
    %1326 = vmatpush1.msra.mxu0 0.0
    %1327 = vmatprep.subr.mxu0 0.0
    %1328 = vmatpush1.msra.mxu0 0.0
    %1329 = vmatprep.subr.mxu0 0.0
    %1330 = vmatpush1.msra.mxu0 0.0
    %1331 = vmatprep.subr.mxu0 0.0
    %1332 = vmatpush1.msra.mxu0 0.0
    %1333 = vmatprep.subr.mxu0 0.0
    %1334 = vmatpush1.msra.mxu0 0.0
    %1335 = vmatprep.subr.mxu0 0.0
    %1336 = vmatpush1.msra.mxu0 0.0
    %1337 = vmatprep.subr.mxu0 0.0
    %1338 = vmatpush1.msra.mxu0 0.0
    %1339 = vmatprep.mubr.f32.mxu0 0.0
    %1340 = vmatmul.mubr.f32.gmra.mrb[0].mxu0 %v1273
    %v1341 = vpop.f32.mrb[0].mxu0
    %v1342 = vadd.f32 %v1271, %v1341
    %v1343 = vpop.f32.mrb[0].mxu0
    %1344 = vdwg.mxu0
    %v1345 = vld [vmem:[#allocation13 + $0x17] sm:$0x1]
    %v1346 = vld [vmem:[#allocation13 + $0x18] sm:$0x1]
    %v1347 = vsel %vm633, %v1342, 0.0
    %v1348 = vrot.slane %v1347, 4
    %v1349 = vadd.f32 %v1347, %v1348
    %v1350 = vrot.slane %v1349, 2
    %v1351 = vadd.f32 %v1349, %v1350
    %v1352 = vrot.slane %v1351, 1
    %v1353 = vadd.f32 %v1351, %v1352
    %v1354 = vmul.f32 %v1353, %v641
    %v1355 = vsub.f32 %v1342, %v1354
    %v1356 = vmul.f32 %v1355, %v1355
    %v1357 = vsel %vm633, %v1356, 0.0
    %v1358 = vrot.slane %v1357, 4
    %v1359 = vadd.f32 %v1357, %v1358
    %v1360 = vrot.slane %v1359, 2
    %v1361 = vadd.f32 %v1359, %v1360
    %v1362 = vrot.slane %v1361, 1
    %v1363 = vadd.f32 %v1361, %v1362
    %v1364 = vmul.f32 %v1363, %v641
    %v1365 = vadd.f32 %v1364, 1e-05
    %v1366 = vrsqrt.pop %v1365
    %v1367 = vmul.f32 %v1355, %v1366
    %v1368 = vlaneseq
    %v1369 = vshrl.u32 %v1368, 7
    %v1370 = vsub.s32 0, %v1369
    %v1371 = vrot.slane %v1345, %v1370
    %v1372 = vmul.f32 %v1367, %v1371
    %v1373 = vlaneseq
    %v1374 = vshrl.u32 %v1373, 7
    %v1375 = vsub.s32 0, %v1374
    %v1376 = vrot.slane %v1346, %v1375
    %v1377 = vadd.f32 %v1372, %v1376
    %v1378 = vmax.f32 %v1377, 0.0
    %v1379 = vadd.f32 %v779, %v1378
    %v1381 = vsel %vm157, %v1379, 0
    %1383 = vmatprep.subr.mxu0 0.0
    %1384 = vmatpush1.msra.mxu0 %v1381
    %1385 = vmatprep.subr.mxu0 0.0
    %1386 = vmatpush1.msra.mxu0 0.0
    %1387 = vmatprep.subr.mxu0 0.0
    %1388 = vmatpush1.msra.mxu0 0.0
    %1389 = vmatprep.subr.mxu0 0.0
    %1390 = vmatpush1.msra.mxu0 0.0
    %1391 = vmatprep.subr.mxu0 0.0
    %1392 = vmatpush1.msra.mxu0 0.0
    %1393 = vmatprep.subr.mxu0 0.0
    %1394 = vmatpush1.msra.mxu0 0.0
    %1395 = vmatprep.subr.mxu0 0.0
    %1396 = vmatpush1.msra.mxu0 0.0
    %1397 = vmatprep.subr.mxu0 0.0
    %1398 = vmatpush1.msra.mxu0 0.0
    %1399 = vmatprep.subr.mxu0 0.0
    %1400 = vmatpush1.msra.mxu0 0.0
    %1401 = vmatprep.subr.mxu0 0.0
    %1402 = vmatpush1.msra.mxu0 0.0
    %1403 = vmatprep.subr.mxu0 0.0
    %1404 = vmatpush1.msra.mxu0 0.0
    %1405 = vmatprep.subr.mxu0 0.0
    %1406 = vmatpush1.msra.mxu0 0.0
    %1407 = vmatprep.subr.mxu0 0.0
    %1408 = vmatpush1.msra.mxu0 0.0
    %1409 = vmatprep.subr.mxu0 0.0
    %1410 = vmatpush1.msra.mxu0 0.0
    %1411 = vmatprep.subr.mxu0 0.0
    %1412 = vmatpush1.msra.mxu0 0.0
    %1413 = vmatprep.subr.mxu0 0.0
    %1414 = vmatpush1.msra.mxu0 0.0
    %1415 = vmatprep.subr.mxu0 0.0
    %1416 = vmatpush1.msra.mxu0 0.0
    %1417 = vmatprep.subr.mxu0 0.0
    %1418 = vmatpush1.msra.mxu0 0.0
    %1419 = vmatprep.subr.mxu0 0.0
    %1420 = vmatpush1.msra.mxu0 0.0
    %1421 = vmatprep.subr.mxu0 0.0
    %1422 = vmatpush1.msra.mxu0 0.0
    %1423 = vmatprep.subr.mxu0 0.0
    %1424 = vmatpush1.msra.mxu0 0.0
    %1425 = vmatprep.subr.mxu0 0.0
    %1426 = vmatpush1.msra.mxu0 0.0
    %1427 = vmatprep.subr.mxu0 0.0
    %1428 = vmatpush1.msra.mxu0 0.0
    %1429 = vmatprep.subr.mxu0 0.0
    %1430 = vmatpush1.msra.mxu0 0.0
    %1431 = vmatprep.subr.mxu0 0.0
    %1432 = vmatpush1.msra.mxu0 0.0
    %1433 = vmatprep.subr.mxu0 0.0
    %1434 = vmatpush1.msra.mxu0 0.0
    %1435 = vmatprep.subr.mxu0 0.0
    %1436 = vmatpush1.msra.mxu0 0.0
    %1437 = vmatprep.subr.mxu0 0.0
    %1438 = vmatpush1.msra.mxu0 0.0
    %1439 = vmatprep.subr.mxu0 0.0
    %1440 = vmatpush1.msra.mxu0 0.0
    %1441 = vmatprep.subr.mxu0 0.0
    %1442 = vmatpush1.msra.mxu0 0.0
    %1443 = vmatprep.subr.mxu0 0.0
    %1444 = vmatpush1.msra.mxu0 0.0
    %1445 = vmatprep.subr.mxu0 0.0
    %1446 = vmatpush1.msra.mxu0 0.0
    %1447 = vmatprep.mubr.f32.mxu0 0.0
    %1448 = vmatmul.mubr.f32.gmra.mrb[0].mxu0 %v149
    %v1449 = vpop.f32.mrb[0].mxu0
    %v1450 = vadd.f32 0.0, %v1449
    %v1451 = vpop.f32.mrb[0].mxu0
    %1452 = vmatprep.mubr.f32.mxu0 0.0
    %1453 = vmatmul.mubr.f32.gmra.mrb[0].mxu0 %v152
    %v1454 = vpop.f32.mrb[0].mxu0
    %v1455 = vadd.f32 0.0, %v1454
    %v1456 = vpop.f32.mrb[0].mxu0
    %1457 = vmatprep.mubr.f32.mxu0 0.0
    %1458 = vmatmul.mubr.f32.gmra.mrb[0].mxu0 %v155
    %v1459 = vpop.f32.mrb[0].mxu0
    %v1460 = vadd.f32 0.0, %v1459
    %v1461 = vpop.f32.mrb[0].mxu0
    %1462 = vdwg.mxu0
    %v1463 = vadd.f32 %v1072, %v1450
    %v1464 = vadd.f32 %v1073, %v1455
    %v1465 = vadd.f32 %v1074, %v1460
    %v1466 = vld [vmem:[#allocation13 + $0x7] sm:$0x1]
    %v1467 = vld [vmem:[#allocation13 + $0x8] sm:$0x1]
    %v1468 = vld [vmem:[#allocation13 + $0x9] sm:$0x1]
    %s1469 = scalar_lea.vmem [#allocation11], 64
    %v1470 = vld [vmem:[%s1469] sm:$0xff]
    %v1471 = vld [vmem:[%s1469 + $0x8] sm:$0xff]
    %v1472 = vld [vmem:[%s1469 + $0x10] sm:$0xff]
    %v1473 = vld [vmem:[%s1469 + $0x18] sm:$0xff]
    %v1475 = vsel %vm251, %v1463, 0
    %v1478 = vsel %vm251, %v1464, 0
    %v1481 = vsel %vm251, %v1465, 0
    %1483 = vmatprep.subr.mxu0 0.0
    %1484 = vmatpush1.msra.mxu0 %v1470
    %1485 = vmatprep.subr.mxu0 0.0
    %1486 = vmatpush1.msra.mxu0 %v1471
    %1487 = vmatprep.subr.mxu0 0.0
    %1488 = vmatpush1.msra.mxu0 %v1472
    %1489 = vmatprep.subr.mxu0 0.0
    %1490 = vmatpush1.msra.mxu0 %v1473
    %1491 = vmatprep.subr.mxu0 0.0
    %1492 = vmatpush1.msra.mxu0 0.0
    %1493 = vmatprep.subr.mxu0 0.0
    %1494 = vmatpush1.msra.mxu0 0.0
    %1495 = vmatprep.subr.mxu0 0.0
    %1496 = vmatpush1.msra.mxu0 0.0
    %1497 = vmatprep.subr.mxu0 0.0
    %1498 = vmatpush1.msra.mxu0 0.0
    %1499 = vmatprep.subr.mxu0 0.0
    %1500 = vmatpush1.msra.mxu0 0.0
    %1501 = vmatprep.subr.mxu0 0.0
    %1502 = vmatpush1.msra.mxu0 0.0
    %1503 = vmatprep.subr.mxu0 0.0
    %1504 = vmatpush1.msra.mxu0 0.0
    %1505 = vmatprep.subr.mxu0 0.0
    %1506 = vmatpush1.msra.mxu0 0.0
    %1507 = vmatprep.subr.mxu0 0.0
    %1508 = vmatpush1.msra.mxu0 0.0
    %1509 = vmatprep.subr.mxu0 0.0
    %1510 = vmatpush1.msra.mxu0 0.0
    %1511 = vmatprep.subr.mxu0 0.0
    %1512 = vmatpush1.msra.mxu0 0.0
    %1513 = vmatprep.subr.mxu0 0.0
    %1514 = vmatpush1.msra.mxu0 0.0
    %1515 = vmatprep.subr.mxu0 0.0
    %1516 = vmatpush1.msra.mxu0 0.0
    %1517 = vmatprep.subr.mxu0 0.0
    %1518 = vmatpush1.msra.mxu0 0.0
    %1519 = vmatprep.subr.mxu0 0.0
    %1520 = vmatpush1.msra.mxu0 0.0
    %1521 = vmatprep.subr.mxu0 0.0
    %1522 = vmatpush1.msra.mxu0 0.0
    %1523 = vmatprep.subr.mxu0 0.0
    %1524 = vmatpush1.msra.mxu0 0.0
    %1525 = vmatprep.subr.mxu0 0.0
    %1526 = vmatpush1.msra.mxu0 0.0
    %1527 = vmatprep.subr.mxu0 0.0
    %1528 = vmatpush1.msra.mxu0 0.0
    %1529 = vmatprep.subr.mxu0 0.0
    %1530 = vmatpush1.msra.mxu0 0.0
    %1531 = vmatprep.subr.mxu0 0.0
    %1532 = vmatpush1.msra.mxu0 0.0
    %1533 = vmatprep.subr.mxu0 0.0
    %1534 = vmatpush1.msra.mxu0 0.0
    %1535 = vmatprep.subr.mxu0 0.0
    %1536 = vmatpush1.msra.mxu0 0.0
    %1537 = vmatprep.subr.mxu0 0.0
    %1538 = vmatpush1.msra.mxu0 0.0
    %1539 = vmatprep.subr.mxu0 0.0
    %1540 = vmatpush1.msra.mxu0 0.0
    %1541 = vmatprep.subr.mxu0 0.0
    %1542 = vmatpush1.msra.mxu0 0.0
    %1543 = vmatprep.subr.mxu0 0.0
    %1544 = vmatpush1.msra.mxu0 0.0
    %1545 = vmatprep.subr.mxu0 0.0
    %1546 = vmatpush1.msra.mxu0 0.0
    %1547 = vmatprep.mubr.f32.mxu0 0.0
    %1548 = vmatmul.mubr.f32.gmra.mrb[0].mxu0 %v1475
    %v1549 = vpop.f32.mrb[0].mxu0
    %v1550 = vadd.f32 0.0, %v1549
    %v1551 = vpop.f32.mrb[0].mxu0
    %1552 = vmatprep.mubr.f32.mxu0 0.0
    %1553 = vmatmul.mubr.f32.gmra.mrb[0].mxu0 %v1478
    %v1554 = vpop.f32.mrb[0].mxu0
    %v1555 = vadd.f32 0.0, %v1554
    %v1556 = vpop.f32.mrb[0].mxu0
    %1557 = vmatprep.mubr.f32.mxu0 0.0
    %1558 = vmatmul.mubr.f32.gmra.mrb[0].mxu0 %v1481
    %v1559 = vpop.f32.mrb[0].mxu0
    %v1560 = vadd.f32 0.0, %v1559
    %v1561 = vpop.f32.mrb[0].mxu0
    %1562 = vdwg.mxu0
    %v1563 = vpack.c.bf16 %v1555, %v1550
    %v1564 = vpack.c.bf16 %v1560, %v1560
    %v1565 = vlaneseq
    %v1566 = vshrl.u32 %v1565, 7
    %v1567 = vsub.s32 0, %v1566
    %v1568 = vrot.slane %v1466, %v1567
    %v1570 = vsel %vm362, %v1564, 0
    %1572 = vmatprep.subr.bf16.mxu0 0
    %1573 = vmatpush1.bf16.msra.mxu0 %v1563
    %1574 = vmatprep.subr.bf16.mxu0 0
    %1575 = vmatpush1.bf16.msra.mxu0 %v1570
    %1576 = vmatprep.subr.bf16.mxu0 0
    %1577 = vmatpush1.bf16.msra.mxu0 0
    %1578 = vmatprep.subr.bf16.mxu0 0
    %1579 = vmatpush1.bf16.msra.mxu0 0
    %1580 = vmatprep.subr.bf16.mxu0 0
    %1581 = vmatpush1.bf16.msra.mxu0 0
    %1582 = vmatprep.subr.bf16.mxu0 0
    %1583 = vmatpush1.bf16.msra.mxu0 0
    %1584 = vmatprep.subr.bf16.mxu0 0
    %1585 = vmatpush1.bf16.msra.mxu0 0
    %1586 = vmatprep.subr.bf16.mxu0 0
    %1587 = vmatpush1.bf16.msra.mxu0 0
    %1588 = vmatprep.subr.bf16.mxu0 0
    %1589 = vmatpush1.bf16.msra.mxu0 0
    %1590 = vmatprep.subr.bf16.mxu0 0
    %1591 = vmatpush1.bf16.msra.mxu0 0
    %1592 = vmatprep.subr.bf16.mxu0 0
    %1593 = vmatpush1.bf16.msra.mxu0 0
    %1594 = vmatprep.subr.bf16.mxu0 0
    %1595 = vmatpush1.bf16.msra.mxu0 0
    %1596 = vmatprep.subr.bf16.mxu0 0
    %1597 = vmatpush1.bf16.msra.mxu0 0
    %1598 = vmatprep.subr.bf16.mxu0 0
    %1599 = vmatpush1.bf16.msra.mxu0 0
    %1600 = vmatprep.subr.bf16.mxu0 0
    %1601 = vmatpush1.bf16.msra.mxu0 0
    %1602 = vmatprep.subr.bf16.mxu0 0
    %1603 = vmatpush1.bf16.msra.mxu0 0
    %1604 = vmatprep.mubr.bf16.mxu0 0
    %1605 = vmatmul.mubr.bf16.gmra.mrb[0].mxu0 %v357
    %v1606 = vpop.f32.mrb[0].mxu0
    %v1607 = vadd.f32 %v1568, %v1606
    %v1608 = vpop.f32.mrb[0].mxu0
    %v1609 = vpop.f32.mrb[0].mxu0
    %v1610 = vadd.f32 %v1568, %v1609
    %v1611 = vpop.f32.mrb[0].mxu0
    %1612 = vmatprep.mubr.bf16.mxu0 0
    %1613 = vmatmul.mubr.bf16.gmra.mrb[0].mxu0 %v360
    %v1614 = vpop.f32.mrb[0].mxu0
    %v1615 = vadd.f32 %v1568, %v1614
    %v1616 = vpop.f32.mrb[0].mxu0
    %v1617 = vpop.f32.mrb[0].mxu0
    %v1618 = vpop.f32.mrb[0].mxu0
    %1619 = vdwg.mxu0
    %v1620 = vsel %vm251, %v1607, 0.0
    %v1621 = vsel %vm251, %v1610, 0.0
    %v1622 = vadd.f32 %v1620, %v1621
    %v1623 = vsel %vm251, %v1615, 0.0
    %v1624 = vadd.f32 %v1622, %v1623
    %v1625 = vrot.slane %v1624, 4
    %v1626 = vadd.f32 %v1624, %v1625
    %v1627 = vrot.slane %v1626, 2
    %v1628 = vadd.f32 %v1626, %v1627
    %v1629 = vrot.slane %v1628, 1
    %v1630 = vadd.f32 %v1628, %v1629
    %v1631 = vmul.f32 %v1630, %v425
    %v1632 = vsub.f32 %v1607, %v1631
    %v1633 = vsub.f32 %v1610, %v1631
    %v1634 = vsub.f32 %v1615, %v1631
    %v1635 = vmul.f32 %v1632, %v1632
    %v1636 = vmul.f32 %v1633, %v1633
    %v1637 = vmul.f32 %v1634, %v1634
    %v1638 = vsel %vm251, %v1635, 0.0
    %v1639 = vsel %vm251, %v1636, 0.0
    %v1640 = vadd.f32 %v1638, %v1639
    %v1641 = vsel %vm251, %v1637, 0.0
    %v1642 = vadd.f32 %v1640, %v1641
    %v1643 = vrot.slane %v1642, 4
    %v1644 = vadd.f32 %v1642, %v1643
    %v1645 = vrot.slane %v1644, 2
    %v1646 = vadd.f32 %v1644, %v1645
    %v1647 = vrot.slane %v1646, 1
    %v1648 = vadd.f32 %v1646, %v1647
    %v1649 = vmul.f32 %v1648, %v425
    %v1650 = vadd.f32 %v1649, 1e-05
    %v1651 = vrsqrt.pop %v1650
    %v1652 = vmul.f32 %v1632, %v1651
    %v1653 = vmul.f32 %v1633, %v1651
    %v1654 = vmul.f32 %v1634, %v1651
    %v1655 = vlaneseq
    %v1656 = vshrl.u32 %v1655, 7
    %v1657 = vsub.s32 0, %v1656
    %v1658 = vrot.slane %v1467, %v1657
    %v1659 = vmul.f32 %v1652, %v1658
    %v1660 = vmul.f32 %v1653, %v1658
    %v1661 = vmul.f32 %v1654, %v1658
    %v1662 = vlaneseq
    %v1663 = vshrl.u32 %v1662, 7
    %v1664 = vsub.s32 0, %v1663
    %v1665 = vrot.slane %v1468, %v1664
    %v1666 = vadd.f32 %v1659, %v1665
    %v1667 = vadd.f32 %v1660, %v1665
    %v1668 = vadd.f32 %v1661, %v1665
    %v1669 = vmax.f32 %v1666, 0.0
    %v1670 = vmax.f32 %v1667, 0.0
    %v1671 = vmax.f32 %v1668, 0.0
    %v1672 = vadd.f32 %v1669, %v1463
    %v1673 = vadd.f32 %v1670, %v1464
    %v1674 = vadd.f32 %v1671, %v1465
    %s1675 = scalar_lea.vmem [#allocation11], 96
    %v1676 = vld [vmem:[%s1675] sm:$0xff]
    %v1677 = vld [vmem:[%s1675 + $0x8] sm:$0xff]
    %v1678 = vld [vmem:[%s1675 + $0x10] sm:$0xff]
    %v1679 = vld [vmem:[%s1675 + $0x18] sm:$0xff]
    %v1681 = vsel %vm251, %v127, 0
    %v1684 = vsel %vm251, %v128, 0
    %v1687 = vsel %vm251, %v129, 0
    %1689 = vmatprep.subr.mxu0 0.0
    %1690 = vmatpush1.msra.mxu0 %v1676
    %1691 = vmatprep.subr.mxu0 0.0
    %1692 = vmatpush1.msra.mxu0 %v1677
    %1693 = vmatprep.subr.mxu0 0.0
    %1694 = vmatpush1.msra.mxu0 %v1678
    %1695 = vmatprep.subr.mxu0 0.0
    %1696 = vmatpush1.msra.mxu0 %v1679
    %1697 = vmatprep.subr.mxu0 0.0
    %1698 = vmatpush1.msra.mxu0 0.0
    %1699 = vmatprep.subr.mxu0 0.0
    %1700 = vmatpush1.msra.mxu0 0.0
    %1701 = vmatprep.subr.mxu0 0.0
    %1702 = vmatpush1.msra.mxu0 0.0
    %1703 = vmatprep.subr.mxu0 0.0
    %1704 = vmatpush1.msra.mxu0 0.0
    %1705 = vmatprep.subr.mxu0 0.0
    %1706 = vmatpush1.msra.mxu0 0.0
    %1707 = vmatprep.subr.mxu0 0.0
    %1708 = vmatpush1.msra.mxu0 0.0
    %1709 = vmatprep.subr.mxu0 0.0
    %1710 = vmatpush1.msra.mxu0 0.0
    %1711 = vmatprep.subr.mxu0 0.0
    %1712 = vmatpush1.msra.mxu0 0.0
    %1713 = vmatprep.subr.mxu0 0.0
    %1714 = vmatpush1.msra.mxu0 0.0
    %1715 = vmatprep.subr.mxu0 0.0
    %1716 = vmatpush1.msra.mxu0 0.0
    %1717 = vmatprep.subr.mxu0 0.0
    %1718 = vmatpush1.msra.mxu0 0.0
    %1719 = vmatprep.subr.mxu0 0.0
    %1720 = vmatpush1.msra.mxu0 0.0
    %1721 = vmatprep.subr.mxu0 0.0
    %1722 = vmatpush1.msra.mxu0 0.0
    %1723 = vmatprep.subr.mxu0 0.0
    %1724 = vmatpush1.msra.mxu0 0.0
    %1725 = vmatprep.subr.mxu0 0.0
    %1726 = vmatpush1.msra.mxu0 0.0
    %1727 = vmatprep.subr.mxu0 0.0
    %1728 = vmatpush1.msra.mxu0 0.0
    %1729 = vmatprep.subr.mxu0 0.0
    %1730 = vmatpush1.msra.mxu0 0.0
    %1731 = vmatprep.subr.mxu0 0.0
    %1732 = vmatpush1.msra.mxu0 0.0
    %1733 = vmatprep.subr.mxu0 0.0
    %1734 = vmatpush1.msra.mxu0 0.0
    %1735 = vmatprep.subr.mxu0 0.0
    %1736 = vmatpush1.msra.mxu0 0.0
    %1737 = vmatprep.subr.mxu0 0.0
    %1738 = vmatpush1.msra.mxu0 0.0
    %1739 = vmatprep.subr.mxu0 0.0
    %1740 = vmatpush1.msra.mxu0 0.0
    %1741 = vmatprep.subr.mxu0 0.0
    %1742 = vmatpush1.msra.mxu0 0.0
    %1743 = vmatprep.subr.mxu0 0.0
    %1744 = vmatpush1.msra.mxu0 0.0
    %1745 = vmatprep.subr.mxu0 0.0
    %1746 = vmatpush1.msra.mxu0 0.0
    %1747 = vmatprep.subr.mxu0 0.0
    %1748 = vmatpush1.msra.mxu0 0.0
    %1749 = vmatprep.subr.mxu0 0.0
    %1750 = vmatpush1.msra.mxu0 0.0
    %1751 = vmatprep.subr.mxu0 0.0
    %1752 = vmatpush1.msra.mxu0 0.0
    %1753 = vmatprep.mubr.f32.mxu0 0.0
    %1754 = vmatmul.mubr.f32.gmra.mrb[0].mxu0 %v1681
    %v1755 = vpop.f32.mrb[0].mxu0
    %v1756 = vadd.f32 0.0, %v1755
    %v1757 = vpop.f32.mrb[0].mxu0
    %1758 = vmatprep.mubr.f32.mxu0 0.0
    %1759 = vmatmul.mubr.f32.gmra.mrb[0].mxu0 %v1684
    %v1760 = vpop.f32.mrb[0].mxu0
    %v1761 = vadd.f32 0.0, %v1760
    %v1762 = vpop.f32.mrb[0].mxu0
    %1763 = vmatprep.mubr.f32.mxu0 0.0
    %1764 = vmatmul.mubr.f32.gmra.mrb[0].mxu0 %v1687
    %v1765 = vpop.f32.mrb[0].mxu0
    %v1766 = vadd.f32 0.0, %v1765
    %v1767 = vpop.f32.mrb[0].mxu0
    %1768 = vdwg.mxu0
    %v1769 = vpack.c.bf16 %v1761, %v1756
    %v1770 = vpack.c.bf16 %v1766, %v1766
    %v1771 = vld [vmem:[#allocation13 + $0xa] sm:$0x1]
    %v1772 = vlaneseq
    %v1773 = vshrl.u32 %v1772, 7
    %v1774 = vsub.s32 0, %v1773
    %v1775 = vrot.slane %v1771, %v1774
    %v1779 = vunpack.c.l.b16 %v124
    %v1780 = vunpack.c.l.b16 %v125
    %v1781 = vunpack.c.l.b16 %v126
    %v1782 = vpack.c.b16 %v1780, %v1779
    %v1783 = vpack.c.b16 %v1781, %v1781
    %v1785 = vsel %vm355, %v1782, 0
    %v1788 = vsel %vm355, %v1783, 0
    %v1791 = vsel %vm362, %v1770, 0
    %1793 = vmatprep.subr.bf16.mxu0 0
    %1794 = vmatpush1.bf16.msra.mxu0 %v1769
    %1795 = vmatprep.subr.bf16.mxu0 0
    %1796 = vmatpush1.bf16.msra.mxu0 %v1791
    %1797 = vmatprep.subr.bf16.mxu0 0
    %1798 = vmatpush1.bf16.msra.mxu0 0
    %1799 = vmatprep.subr.bf16.mxu0 0
    %1800 = vmatpush1.bf16.msra.mxu0 0
    %1801 = vmatprep.subr.bf16.mxu0 0
    %1802 = vmatpush1.bf16.msra.mxu0 0
    %1803 = vmatprep.subr.bf16.mxu0 0
    %1804 = vmatpush1.bf16.msra.mxu0 0
    %1805 = vmatprep.subr.bf16.mxu0 0
    %1806 = vmatpush1.bf16.msra.mxu0 0
    %1807 = vmatprep.subr.bf16.mxu0 0
    %1808 = vmatpush1.bf16.msra.mxu0 0
    %1809 = vmatprep.subr.bf16.mxu0 0
    %1810 = vmatpush1.bf16.msra.mxu0 0
    %1811 = vmatprep.subr.bf16.mxu0 0
    %1812 = vmatpush1.bf16.msra.mxu0 0
    %1813 = vmatprep.subr.bf16.mxu0 0
    %1814 = vmatpush1.bf16.msra.mxu0 0
    %1815 = vmatprep.subr.bf16.mxu0 0
    %1816 = vmatpush1.bf16.msra.mxu0 0
    %1817 = vmatprep.subr.bf16.mxu0 0
    %1818 = vmatpush1.bf16.msra.mxu0 0
    %1819 = vmatprep.subr.bf16.mxu0 0
    %1820 = vmatpush1.bf16.msra.mxu0 0
    %1821 = vmatprep.subr.bf16.mxu0 0
    %1822 = vmatpush1.bf16.msra.mxu0 0
    %1823 = vmatprep.subr.bf16.mxu0 0
    %1824 = vmatpush1.bf16.msra.mxu0 0
    %1825 = vmatprep.mubr.bf16.mxu0 0
    %1826 = vmatmul.mubr.bf16.gmra.mrb[0].mxu0 %v1785
    %v1827 = vpop.f32.mrb[0].mxu0
    %v1828 = vadd.f32 %v1775, %v1827
    %v1829 = vpop.f32.mrb[0].mxu0
    %v1830 = vpop.f32.mrb[0].mxu0
    %v1831 = vadd.f32 %v1775, %v1830
    %v1832 = vpop.f32.mrb[0].mxu0
    %1833 = vmatprep.mubr.bf16.mxu0 0
    %1834 = vmatmul.mubr.bf16.gmra.mrb[0].mxu0 %v1788
    %v1835 = vpop.f32.mrb[0].mxu0
    %v1836 = vadd.f32 %v1775, %v1835
    %v1837 = vpop.f32.mrb[0].mxu0
    %v1838 = vpop.f32.mrb[0].mxu0
    %v1839 = vpop.f32.mrb[0].mxu0
    %1840 = vdwg.mxu0
    %v1841 = vld [vmem:[#allocation13 + $0xb] sm:$0x1]
    %v1842 = vld [vmem:[#allocation13 + $0xc] sm:$0x1]
    %v1843 = vsel %vm251, %v1828, 0.0
    %v1844 = vsel %vm251, %v1831, 0.0
    %v1845 = vadd.f32 %v1843, %v1844
    %v1846 = vsel %vm251, %v1836, 0.0
    %v1847 = vadd.f32 %v1845, %v1846
    %v1848 = vrot.slane %v1847, 4
    %v1849 = vadd.f32 %v1847, %v1848
    %v1850 = vrot.slane %v1849, 2
    %v1851 = vadd.f32 %v1849, %v1850
    %v1852 = vrot.slane %v1851, 1
    %v1853 = vadd.f32 %v1851, %v1852
    %v1854 = vmul.f32 %v1853, %v425
    %v1855 = vsub.f32 %v1828, %v1854
    %v1856 = vsub.f32 %v1831, %v1854
    %v1857 = vsub.f32 %v1836, %v1854
    %v1858 = vmul.f32 %v1855, %v1855
    %v1859 = vmul.f32 %v1856, %v1856
    %v1860 = vmul.f32 %v1857, %v1857
    %v1861 = vsel %vm251, %v1858, 0.0
    %v1862 = vsel %vm251, %v1859, 0.0
    %v1863 = vadd.f32 %v1861, %v1862
    %v1864 = vsel %vm251, %v1860, 0.0
    %v1865 = vadd.f32 %v1863, %v1864
    %v1866 = vrot.slane %v1865, 4
    %v1867 = vadd.f32 %v1865, %v1866
    %v1868 = vrot.slane %v1867, 2
    %v1869 = vadd.f32 %v1867, %v1868
    %v1870 = vrot.slane %v1869, 1
    %v1871 = vadd.f32 %v1869, %v1870
    %v1872 = vmul.f32 %v1871, %v425
    %v1873 = vadd.f32 %v1872, 1e-05
    %v1874 = vrsqrt.pop %v1873
    %v1875 = vmul.f32 %v1855, %v1874
    %v1876 = vmul.f32 %v1856, %v1874
    %v1877 = vmul.f32 %v1857, %v1874
    %v1878 = vlaneseq
    %v1879 = vshrl.u32 %v1878, 7
    %v1880 = vsub.s32 0, %v1879
    %v1881 = vrot.slane %v1841, %v1880
    %v1882 = vmul.f32 %v1875, %v1881
    %v1883 = vmul.f32 %v1876, %v1881
    %v1884 = vmul.f32 %v1877, %v1881
    %v1885 = vlaneseq
    %v1886 = vshrl.u32 %v1885, 7
    %v1887 = vsub.s32 0, %v1886
    %v1888 = vrot.slane %v1842, %v1887
    %v1889 = vadd.f32 %v1882, %v1888
    %v1890 = vadd.f32 %v1883, %v1888
    %v1891 = vadd.f32 %v1884, %v1888
    %v1892 = vmax.f32 %v1889, 0.0
    %v1893 = vmax.f32 %v1890, 0.0
    %v1894 = vmax.f32 %v1891, 0.0
    %v1895 = vadd.f32 %v1892, %v127
    %v1896 = vadd.f32 %v1893, %v128
    %v1897 = vadd.f32 %v1894, %v129
    %1898 = vmatprep.subr.mxu0 0.0
    %1899 = vmatpush1.msra.mxu0 %v1672
    %1900 = vmatprep.subr.mxu0 0.0
    %1901 = vmatpush1.msra.mxu0 %v1673
    %1902 = vmatprep.subr.mxu0 0.0
    %1903 = vmatpush1.msra.mxu0 %v1674
    %1904 = vmatprep.subr.mxu0 0.0
    %1905 = vmatpush1.msra.mxu0 0.0
    %1906 = vmatprep.subr.mxu0 0.0
    %1907 = vmatpush1.msra.mxu0 0.0
    %1908 = vmatprep.subr.mxu0 0.0
    %1909 = vmatpush1.msra.mxu0 0.0
    %1910 = vmatprep.subr.mxu0 0.0
    %1911 = vmatpush1.msra.mxu0 0.0
    %1912 = vmatprep.subr.mxu0 0.0
    %1913 = vmatpush1.msra.mxu0 0.0
    %1914 = vmatprep.subr.mxu0 0.0
    %1915 = vmatpush1.msra.mxu0 0.0
    %1916 = vmatprep.subr.mxu0 0.0
    %1917 = vmatpush1.msra.mxu0 0.0
    %1918 = vmatprep.subr.mxu0 0.0
    %1919 = vmatpush1.msra.mxu0 0.0
    %1920 = vmatprep.subr.mxu0 0.0
    %1921 = vmatpush1.msra.mxu0 0.0
    %1922 = vmatprep.subr.mxu0 0.0
    %1923 = vmatpush1.msra.mxu0 0.0
    %1924 = vmatprep.subr.mxu0 0.0
    %1925 = vmatpush1.msra.mxu0 0.0
    %1926 = vmatprep.subr.mxu0 0.0
    %1927 = vmatpush1.msra.mxu0 0.0
    %1928 = vmatprep.subr.mxu0 0.0
    %1929 = vmatpush1.msra.mxu0 0.0
    %1930 = vmatprep.subr.mxu0 0.0
    %1931 = vmatpush1.msra.mxu0 0.0
    %1932 = vmatprep.subr.mxu0 0.0
    %1933 = vmatpush1.msra.mxu0 0.0
    %1934 = vmatprep.subr.mxu0 0.0
    %1935 = vmatpush1.msra.mxu0 0.0
    %1936 = vmatprep.subr.mxu0 0.0
    %1937 = vmatpush1.msra.mxu0 0.0
    %1938 = vmatprep.subr.mxu0 0.0
    %1939 = vmatpush1.msra.mxu0 0.0
    %1940 = vmatprep.subr.mxu0 0.0
    %1941 = vmatpush1.msra.mxu0 0.0
    %1942 = vmatprep.subr.mxu0 0.0
    %1943 = vmatpush1.msra.mxu0 0.0
    %1944 = vmatprep.subr.mxu0 0.0
    %1945 = vmatpush1.msra.mxu0 0.0
    %1946 = vmatprep.subr.mxu0 0.0
    %1947 = vmatpush1.msra.mxu0 0.0
    %1948 = vmatprep.subr.mxu0 0.0
    %1949 = vmatpush1.msra.mxu0 0.0
    %1950 = vmatprep.subr.mxu0 0.0
    %1951 = vmatpush1.msra.mxu0 0.0
    %1952 = vmatprep.subr.mxu0 0.0
    %1953 = vmatpush1.msra.mxu0 0.0
    %1954 = vmatprep.subr.mxu0 0.0
    %1955 = vmatpush1.msra.mxu0 0.0
    %1956 = vmatprep.subr.mxu0 0.0
    %1957 = vmatpush1.msra.mxu0 0.0
    %1958 = vmatprep.subr.mxu0 0.0
    %1959 = vmatpush1.msra.mxu0 0.0
    %1960 = vmatprep.subr.mxu0 0.0
    %1961 = vmatpush1.msra.mxu0 0.0
    %1962 = vmatprep.mubr.f32.mxu0 0.0
    %1963 = vmatmul.mubr.f32.gmra.mrb[0].mxu0 %v481
    %v1964 = vpop.f32.mrb[0].mxu0
    %v1965 = vadd.f32 0.0, %v1964
    %v1966 = vpop.f32.mrb[0].mxu0
    %1967 = vdwg.mxu0
    %v1968 = vmul.f32 %v140, %v1965
    %1969 = vmatprep.subr.mxu0 0.0
    %1970 = vmatpush1.msra.mxu0 %v1895
    %1971 = vmatprep.subr.mxu0 0.0
    %1972 = vmatpush1.msra.mxu0 %v1896
    %1973 = vmatprep.subr.mxu0 0.0
    %1974 = vmatpush1.msra.mxu0 %v1897
    %1975 = vmatprep.subr.mxu0 0.0
    %1976 = vmatpush1.msra.mxu0 0.0
    %1977 = vmatprep.subr.mxu0 0.0
    %1978 = vmatpush1.msra.mxu0 0.0
    %1979 = vmatprep.subr.mxu0 0.0
    %1980 = vmatpush1.msra.mxu0 0.0
    %1981 = vmatprep.subr.mxu0 0.0
    %1982 = vmatpush1.msra.mxu0 0.0
    %1983 = vmatprep.subr.mxu0 0.0
    %1984 = vmatpush1.msra.mxu0 0.0
    %1985 = vmatprep.subr.mxu0 0.0
    %1986 = vmatpush1.msra.mxu0 0.0
    %1987 = vmatprep.subr.mxu0 0.0
    %1988 = vmatpush1.msra.mxu0 0.0
    %1989 = vmatprep.subr.mxu0 0.0
    %1990 = vmatpush1.msra.mxu0 0.0
    %1991 = vmatprep.subr.mxu0 0.0
    %1992 = vmatpush1.msra.mxu0 0.0
    %1993 = vmatprep.subr.mxu0 0.0
    %1994 = vmatpush1.msra.mxu0 0.0
    %1995 = vmatprep.subr.mxu0 0.0
    %1996 = vmatpush1.msra.mxu0 0.0
    %1997 = vmatprep.subr.mxu0 0.0
    %1998 = vmatpush1.msra.mxu0 0.0
    %1999 = vmatprep.subr.mxu0 0.0
    %2000 = vmatpush1.msra.mxu0 0.0
    %2001 = vmatprep.subr.mxu0 0.0
    %2002 = vmatpush1.msra.mxu0 0.0
    %2003 = vmatprep.subr.mxu0 0.0
    %2004 = vmatpush1.msra.mxu0 0.0
    %2005 = vmatprep.subr.mxu0 0.0
    %2006 = vmatpush1.msra.mxu0 0.0
    %2007 = vmatprep.subr.mxu0 0.0
    %2008 = vmatpush1.msra.mxu0 0.0
    %2009 = vmatprep.subr.mxu0 0.0
    %2010 = vmatpush1.msra.mxu0 0.0
    %2011 = vmatprep.subr.mxu0 0.0
    %2012 = vmatpush1.msra.mxu0 0.0
    %2013 = vmatprep.subr.mxu0 0.0
    %2014 = vmatpush1.msra.mxu0 0.0
    %2015 = vmatprep.subr.mxu0 0.0
    %2016 = vmatpush1.msra.mxu0 0.0
    %2017 = vmatprep.subr.mxu0 0.0
    %2018 = vmatpush1.msra.mxu0 0.0
    %2019 = vmatprep.subr.mxu0 0.0
    %2020 = vmatpush1.msra.mxu0 0.0
    %2021 = vmatprep.subr.mxu0 0.0
    %2022 = vmatpush1.msra.mxu0 0.0
    %2023 = vmatprep.subr.mxu0 0.0
    %2024 = vmatpush1.msra.mxu0 0.0
    %2025 = vmatprep.subr.mxu0 0.0
    %2026 = vmatpush1.msra.mxu0 0.0
    %2027 = vmatprep.subr.mxu0 0.0
    %2028 = vmatpush1.msra.mxu0 0.0
    %2029 = vmatprep.subr.mxu0 0.0
    %2030 = vmatpush1.msra.mxu0 0.0
    %2031 = vmatprep.subr.mxu0 0.0
    %2032 = vmatpush1.msra.mxu0 0.0
    %2033 = vmatprep.mubr.f32.mxu0 0.0
    %2034 = vmatmul.mubr.f32.gmra.mrb[0].mxu0 %v481
    %v2035 = vpop.f32.mrb[0].mxu0
    %v2036 = vadd.f32 0.0, %v2035
    %v2037 = vpop.f32.mrb[0].mxu0
    %2038 = vdwg.mxu0
    %v2039 = vmul.f32 %v140, %v2036
    %s2040 = scalar_lea.vmem [#allocation11], 256
    %v2041 = vld [vmem:[%s2040] sm:$0xff]
    %v2042 = vld [vmem:[%s2040 + $0x8] sm:$0xff]
    %v2043 = vld [vmem:[%s2040 + $0x10] sm:$0xff]
    %v2044 = vld [vmem:[%s2040 + $0x18] sm:$0xff]
    %s2045 = scalar_lea.vmem [#allocation11], 288
    %v2046 = vld [vmem:[%s2045] sm:$0xff]
    %v2047 = vld [vmem:[%s2045 + $0x8] sm:$0xff]
    %v2048 = vld [vmem:[%s2045 + $0x10] sm:$0xff]
    %v2049 = vld [vmem:[%s2045 + $0x18] sm:$0xff]
    %v2051 = vsel %vm251, %v2039, 0
    %2053 = vmatprep.subr.mxu0 0.0
    %2054 = vmatpush1.msra.mxu0 %v2046
    %2055 = vmatprep.subr.mxu0 0.0
    %2056 = vmatpush1.msra.mxu0 %v2047
    %2057 = vmatprep.subr.mxu0 0.0
    %2058 = vmatpush1.msra.mxu0 %v2048
    %2059 = vmatprep.subr.mxu0 0.0
    %2060 = vmatpush1.msra.mxu0 %v2049
    %2061 = vmatprep.subr.mxu0 0.0
    %2062 = vmatpush1.msra.mxu0 0.0
    %2063 = vmatprep.subr.mxu0 0.0
    %2064 = vmatpush1.msra.mxu0 0.0
    %2065 = vmatprep.subr.mxu0 0.0
    %2066 = vmatpush1.msra.mxu0 0.0
    %2067 = vmatprep.subr.mxu0 0.0
    %2068 = vmatpush1.msra.mxu0 0.0
    %2069 = vmatprep.subr.mxu0 0.0
    %2070 = vmatpush1.msra.mxu0 0.0
    %2071 = vmatprep.subr.mxu0 0.0
    %2072 = vmatpush1.msra.mxu0 0.0
    %2073 = vmatprep.subr.mxu0 0.0
    %2074 = vmatpush1.msra.mxu0 0.0
    %2075 = vmatprep.subr.mxu0 0.0
    %2076 = vmatpush1.msra.mxu0 0.0
    %2077 = vmatprep.subr.mxu0 0.0
    %2078 = vmatpush1.msra.mxu0 0.0
    %2079 = vmatprep.subr.mxu0 0.0
    %2080 = vmatpush1.msra.mxu0 0.0
    %2081 = vmatprep.subr.mxu0 0.0
    %2082 = vmatpush1.msra.mxu0 0.0
    %2083 = vmatprep.subr.mxu0 0.0
    %2084 = vmatpush1.msra.mxu0 0.0
    %2085 = vmatprep.subr.mxu0 0.0
    %2086 = vmatpush1.msra.mxu0 0.0
    %2087 = vmatprep.subr.mxu0 0.0
    %2088 = vmatpush1.msra.mxu0 0.0
    %2089 = vmatprep.subr.mxu0 0.0
    %2090 = vmatpush1.msra.mxu0 0.0
    %2091 = vmatprep.subr.mxu0 0.0
    %2092 = vmatpush1.msra.mxu0 0.0
    %2093 = vmatprep.subr.mxu0 0.0
    %2094 = vmatpush1.msra.mxu0 0.0
    %2095 = vmatprep.subr.mxu0 0.0
    %2096 = vmatpush1.msra.mxu0 0.0
    %2097 = vmatprep.subr.mxu0 0.0
    %2098 = vmatpush1.msra.mxu0 0.0
    %2099 = vmatprep.subr.mxu0 0.0
    %2100 = vmatpush1.msra.mxu0 0.0
    %2101 = vmatprep.subr.mxu0 0.0
    %2102 = vmatpush1.msra.mxu0 0.0
    %2103 = vmatprep.subr.mxu0 0.0
    %2104 = vmatpush1.msra.mxu0 0.0
    %2105 = vmatprep.subr.mxu0 0.0
    %2106 = vmatpush1.msra.mxu0 0.0
    %2107 = vmatprep.subr.mxu0 0.0
    %2108 = vmatpush1.msra.mxu0 0.0
    %2109 = vmatprep.subr.mxu0 0.0
    %2110 = vmatpush1.msra.mxu0 0.0
    %2111 = vmatprep.subr.mxu0 0.0
    %2112 = vmatpush1.msra.mxu0 0.0
    %2113 = vmatprep.subr.mxu0 0.0
    %2114 = vmatpush1.msra.mxu0 0.0
    %2115 = vmatprep.subr.mxu0 0.0
    %2116 = vmatpush1.msra.mxu0 0.0
    %2117 = vmatprep.mubr.f32.mxu0 0.0
    %2118 = vmatmul.mubr.f32.gmra.mrb[0].mxu0 %v2051
    %v2119 = vpop.f32.mrb[0].mxu0
    %v2120 = vadd.f32 0.0, %v2119
    %v2121 = vpop.f32.mrb[0].mxu0
    %2122 = vdwg.mxu0
    %v2124 = vsel %vm251, %v1968, 0
    %2126 = vmatprep.subr.mxu0 0.0
    %2127 = vmatpush1.msra.mxu0 %v2041
    %2128 = vmatprep.subr.mxu0 0.0
    %2129 = vmatpush1.msra.mxu0 %v2042
    %2130 = vmatprep.subr.mxu0 0.0
    %2131 = vmatpush1.msra.mxu0 %v2043
    %2132 = vmatprep.subr.mxu0 0.0
    %2133 = vmatpush1.msra.mxu0 %v2044
    %2134 = vmatprep.subr.mxu0 0.0
    %2135 = vmatpush1.msra.mxu0 0.0
    %2136 = vmatprep.subr.mxu0 0.0
    %2137 = vmatpush1.msra.mxu0 0.0
    %2138 = vmatprep.subr.mxu0 0.0
    %2139 = vmatpush1.msra.mxu0 0.0
    %2140 = vmatprep.subr.mxu0 0.0
    %2141 = vmatpush1.msra.mxu0 0.0
    %2142 = vmatprep.subr.mxu0 0.0
    %2143 = vmatpush1.msra.mxu0 0.0
    %2144 = vmatprep.subr.mxu0 0.0
    %2145 = vmatpush1.msra.mxu0 0.0
    %2146 = vmatprep.subr.mxu0 0.0
    %2147 = vmatpush1.msra.mxu0 0.0
    %2148 = vmatprep.subr.mxu0 0.0
    %2149 = vmatpush1.msra.mxu0 0.0
    %2150 = vmatprep.subr.mxu0 0.0
    %2151 = vmatpush1.msra.mxu0 0.0
    %2152 = vmatprep.subr.mxu0 0.0
    %2153 = vmatpush1.msra.mxu0 0.0
    %2154 = vmatprep.subr.mxu0 0.0
    %2155 = vmatpush1.msra.mxu0 0.0
    %2156 = vmatprep.subr.mxu0 0.0
    %2157 = vmatpush1.msra.mxu0 0.0
    %2158 = vmatprep.subr.mxu0 0.0
    %2159 = vmatpush1.msra.mxu0 0.0
    %2160 = vmatprep.subr.mxu0 0.0
    %2161 = vmatpush1.msra.mxu0 0.0
    %2162 = vmatprep.subr.mxu0 0.0
    %2163 = vmatpush1.msra.mxu0 0.0
    %2164 = vmatprep.subr.mxu0 0.0
    %2165 = vmatpush1.msra.mxu0 0.0
    %2166 = vmatprep.subr.mxu0 0.0
    %2167 = vmatpush1.msra.mxu0 0.0
    %2168 = vmatprep.subr.mxu0 0.0
    %2169 = vmatpush1.msra.mxu0 0.0
    %2170 = vmatprep.subr.mxu0 0.0
    %2171 = vmatpush1.msra.mxu0 0.0
    %2172 = vmatprep.subr.mxu0 0.0
    %2173 = vmatpush1.msra.mxu0 0.0
    %2174 = vmatprep.subr.mxu0 0.0
    %2175 = vmatpush1.msra.mxu0 0.0
    %2176 = vmatprep.subr.mxu0 0.0
    %2177 = vmatpush1.msra.mxu0 0.0
    %2178 = vmatprep.subr.mxu0 0.0
    %2179 = vmatpush1.msra.mxu0 0.0
    %2180 = vmatprep.subr.mxu0 0.0
    %2181 = vmatpush1.msra.mxu0 0.0
    %2182 = vmatprep.subr.mxu0 0.0
    %2183 = vmatpush1.msra.mxu0 0.0
    %2184 = vmatprep.subr.mxu0 0.0
    %2185 = vmatpush1.msra.mxu0 0.0
    %2186 = vmatprep.subr.mxu0 0.0
    %2187 = vmatpush1.msra.mxu0 0.0
    %2188 = vmatprep.subr.mxu0 0.0
    %2189 = vmatpush1.msra.mxu0 0.0
    %2190 = vmatprep.mubr.f32.mxu0 0.0
    %2191 = vmatmul.mubr.f32.gmra.mrb[0].mxu0 %v2124
    %v2192 = vpop.f32.mrb[0].mxu0
    %v2193 = vadd.f32 %v2120, %v2192
    %v2194 = vpop.f32.mrb[0].mxu0
    %2195 = vdwg.mxu0
    %v2196 = vld [vmem:[#allocation13 + $0x19] sm:$0x1]
    %v2197 = vlaneseq
    %v2198 = vshrl.u32 %v2197, 7
    %v2199 = vsub.s32 0, %v2198
    %v2200 = vrot.slane %v2196, %v2199
    %v2201 = vadd.f32 %v2193, %v2200
    %vm2202 = vcmask 58368
    %2203 = vst.msk [vmem:[#allocation14] sm:$0x3] %vm2202, %v2201
    // Predicated region
    $region58: #{forward.1} parent=1 // pred_check
      _
    $region59: #{forward.1} parent=1 // pred_check_branch
      %2205 = sbr.rel (0) target = $region61
    $region60: #{forward.1} parent=1 // pred_region
      %s2207 = ssub.s32 32, 32
      %2208 = vsyncadd [#allocation4], %s2207
      %s2210 = sshll.u32 [#allocation14], 4
      %s2211 = int_to_ptr.vmem [resolvable:$true] %s2210
      %2213 = dma.vmem_to_hbm [thread:$0]  %s2211, 32, %s7, [#allocation4]
    $region61: #{forward.1} parent=1 // pred_fallthru
      _
    // Predicated region
    $region62: #{forward.1} parent=1 // pred_check
      _
    $region63: #{forward.1} parent=1 // pred_check_branch
      %2215 = sbr.rel (0) target = $region65
    $region64: #{forward.1} parent=1 // pred_region
      %2216 = dma.done [#allocation4], 32
    $region65: #{forward.1} parent=1 // pred_fallthru
      _
    %2217 = vsyncpa [#allocation3], 1
    %2218 = vsyncpa [#allocation6], 1
    %2219 = vsyncpa [#allocation9], 1
    %2220 = vsyncpa [#allocation12], 1
    %2221 = vsyncpa [#allocation4], 1

</llo_original>
